<compile_context>
chip_gen: v7x
topology: tpu7x:2x2x1
jax: 0.10.0
libtpu: 0.0.40
codegen_flags: <defaults>
</compile_context>

<pallas_src>
import numpy as np
import jax
import jax.numpy as jnp
from jax.experimental import pallas as pl
from jax.experimental.pallas import tpu as pltpu

H = W = 14
HW = H * W                                # 196 (flattened spatial, lane axis)
CIN = 128
COUT = 32
N_PRE = 14                                # x147 .. x238
C_OUT_TOTAL = 256 + (N_PRE + 2) * COUT    # 768
CONV_ROW = 256 + N_PRE * COUT             # 704 (row offset of conv result)


def _build_tap_masks():
    """(9, 1, 196) f32 validity mask per 3x3 tap (replaces input zero-padding)."""
    h = np.arange(HW) // W
    w = np.arange(HW) % W
    m = np.zeros((9, 1, HW), np.float32)
    for kh in range(3):
        for kw in range(3):
            dh, dw = kh - 1, kw - 1
            valid = ((h + dh >= 0) & (h + dh < H) &
                     (w + dw >= 0) & (w + dw < W))
            m[kh * 3 + kw, 0, :] = valid
    return m


_TAP_MASKS = _build_tap_masks()


def pack_weight(weight_oihw):
    """OIHW (32,128,3,3) -> (9*32, 128), row = (kh*3+kw)*32 + co.

    Static parameter transform -- do it once, outside the per-call path."""
    return jnp.transpose(weight_oihw, (2, 3, 0, 1)).reshape(9 * COUT, CIN)


def fused_conv_cat_kernel(x_ref, w_ref, m_ref, x140_ref, *rest):
    """Refs (all VMEM, NCHW-native (C, H*W) layout):
       x_ref   : (128, 196)   conv input (x244)
       w_ref   : (288, 128)   packed conv weight, row = tap*32 + cout
       m_ref   : (9, 1, 196)  per-tap boundary masks
       x140_ref: (256, 196)
       rest[:14]: (32, 196)   x147 .. x238
       rest[14] : (32, 196)   x252
       rest[15] : (768, 196)  output
    """
    pre_refs = rest[:N_PRE]
    x252_ref = rest[N_PRE]
    o_ref = rest[N_PRE + 1]

    # ---- 3x3 conv (pad=1): one MXU matmul for all 9 taps -----------------
    x = x_ref[...]                                            # (128, 196)
    taps = jnp.dot(w_ref[...], x,
                   preferred_element_type=jnp.float32)        # (288, 196)

    # center tap (dh = dw = 0): no shift, no boundary mask
    acc = taps[4 * COUT:5 * COUT, :]                          # (32, 196)
    for dh in (-1, 0, 1):
        for dw in (-1, 0, 1):
            if dh == 0 and dw == 0:
                continue
            k = (dh + 1) * 3 + (dw + 1)
            c = taps[k * COUT:(k + 1) * COUT, :]              # (32, 196)
            # spatial shift of the flattened 14x14 map (static lane roll)
            c = jnp.roll(c, -(dh * W + dw), axis=1)
            # zero out positions whose tap falls outside the image
            acc = acc + c * m_ref[k]                          # (1,196) bcast

    # ---- channel concat: full-lane stores at 8-aligned sublane offsets ---
    o_ref[0:256, :] = x140_ref[...]
    for i in range(N_PRE):
        o_ref[256 + COUT * i:256 + COUT * (i + 1), :] = pre_refs[i][...]
    o_ref[CONV_ROW:CONV_ROW + COUT, :] = acc                  # x245 (conv)
    o_ref[CONV_ROW + COUT:C_OUT_TOTAL, :] = x252_ref[...]


@jax.jit
def fused_conv_cat(x244, w_packed, x140, pre_list, x252):
    # All layout conversions below are free (contiguity-preserving) reshapes.
    ins = [x244.reshape(CIN, HW),
           w_packed,
           jnp.asarray(_TAP_MASKS),
           x140.reshape(256, HW)]
    ins += [p.reshape(COUT, HW) for p in pre_list]
    ins += [x252.reshape(COUT, HW)]

    vmem = pl.BlockSpec(memory_space=pltpu.MemorySpace.VMEM)
    out = pl.pallas_call(
        fused_conv_cat_kernel,
        out_shape=jax.ShapeDtypeStruct((C_OUT_TOTAL, HW), jnp.float32),
        in_specs=[vmem] * len(ins),
        out_specs=vmem,
    )(*ins)

    # (768, 196) -> (1, 768, 14, 14): free reshape, no transpose.
    return out.reshape(1, C_OUT_TOTAL, H, W)


if __name__ == "__main__":
    key = jax.random.PRNGKey(0)
    keys = jax.random.split(key, 20)

    x244 = jax.random.normal(keys[0], (1, CIN, H, W), jnp.float32)
    x140 = jax.random.normal(keys[1], (1, 256, H, W), jnp.float32)
    pre = [jax.random.normal(keys[2 + i], (1, COUT, H, W), jnp.float32)
           for i in range(N_PRE)]
    x252 = jax.random.normal(keys[16], (1, COUT, H, W), jnp.float32)
    # Conv weight in PyTorch OIHW layout: (32, 128, 3, 3).
    weight = jax.random.normal(keys[17], (COUT, CIN, 3, 3), jnp.float32) * 0.05

    # Weight repacking hoisted out of the hot path (static module parameter).
    w_packed = jax.block_until_ready(pack_weight(weight))

    out = fused_conv_cat(x244, w_packed, x140, pre, x252)
    out = jax.block_until_ready(out)
    assert out.shape == (1, C_OUT_TOTAL, H, W), out.shape

    # Pure-JAX reference check.
    conv_ref = jax.lax.conv_general_dilated(
        x244, weight, window_strides=(1, 1), padding=((1, 1), (1, 1)),
        dimension_numbers=("NCHW", "OIHW", "NCHW"))
    ref = jnp.concatenate([x140] + pre + [conv_ref, x252], axis=1)
    max_err = float(jnp.max(jnp.abs(out - ref)))
    assert jnp.allclose(out, ref, rtol=2e-3, atol=2e-3), max_err

    print("KERNEL_OK")
</pallas_src>

<mosaic_0001>
module attributes {stable_mosaic.version = 11 : i64} {
  func.func @fused_conv_cat_kernel(%arg0: memref<128x196xf32, #tpu.memory_space<vmem>>, %arg1: memref<288x128xf32, #tpu.memory_space<vmem>>, %arg2: memref<9x1x196xf32, #tpu.memory_space<vmem>>, %arg3: memref<256x196xf32, #tpu.memory_space<vmem>>, %arg4: memref<32x196xf32, #tpu.memory_space<vmem>>, %arg5: memref<32x196xf32, #tpu.memory_space<vmem>>, %arg6: memref<32x196xf32, #tpu.memory_space<vmem>>, %arg7: memref<32x196xf32, #tpu.memory_space<vmem>>, %arg8: memref<32x196xf32, #tpu.memory_space<vmem>>, %arg9: memref<32x196xf32, #tpu.memory_space<vmem>>, %arg10: memref<32x196xf32, #tpu.memory_space<vmem>>, %arg11: memref<32x196xf32, #tpu.memory_space<vmem>>, %arg12: memref<32x196xf32, #tpu.memory_space<vmem>>, %arg13: memref<32x196xf32, #tpu.memory_space<vmem>>, %arg14: memref<32x196xf32, #tpu.memory_space<vmem>>, %arg15: memref<32x196xf32, #tpu.memory_space<vmem>>, %arg16: memref<32x196xf32, #tpu.memory_space<vmem>>, %arg17: memref<32x196xf32, #tpu.memory_space<vmem>>, %arg18: memref<32x196xf32, #tpu.memory_space<vmem>>, %arg19: memref<768x196xf32, #tpu.memory_space<vmem>>) attributes {dimension_semantics = [], scalar_prefetch = 0 : i64, scratch_operands = 0 : i64, tpu.core_type = #tpu.core_type<tc>} {
    %c0 = arith.constant 0 : index
    %c0_0 = arith.constant 0 : index
    %0 = vector.load %arg0[%c0, %c0_0] : memref<128x196xf32, #tpu.memory_space<vmem>>, vector<128x196xf32>
    %c0_1 = arith.constant 0 : index
    %c0_2 = arith.constant 0 : index
    %1 = vector.load %arg1[%c0_1, %c0_2] : memref<288x128xf32, #tpu.memory_space<vmem>>, vector<288x128xf32>
    %cst = arith.constant dense<0.000000e+00> : vector<288x196xf32>
    %2 = tpu.matmul %1, %0, %cst {dimension_numbers = #tpu.dot_dimension_numbers<[1], [0], [0], [1], [0, 0, 1, 1], [], []>} : vector<288x128xf32>, vector<128x196xf32>, vector<288x196xf32> -> vector<288x196xf32>
    %3 = vector.extract_strided_slice %2 {offsets = [128, 0], sizes = [32, 196], strides = [1, 1]} : vector<288x196xf32> to vector<32x196xf32>
    %4 = vector.extract_strided_slice %2 {offsets = [0, 0], sizes = [32, 196], strides = [1, 1]} : vector<288x196xf32> to vector<32x196xf32>
    %5 = vector.extract_strided_slice %4 {offsets = [0, 181], sizes = [32, 15], strides = [1, 1]} : vector<32x196xf32> to vector<32x15xf32>
    %6 = vector.extract_strided_slice %4 {offsets = [0, 0], sizes = [32, 181], strides = [1, 1]} : vector<32x196xf32> to vector<32x181xf32>
    %7 = tpu.concatenate %5, %6 in 1 : vector<32x15xf32>, vector<32x181xf32> -> vector<32x196xf32>
    %c0_3 = arith.constant 0 : index
    %c0_4 = arith.constant 0 : index
    %c0_5 = arith.constant 0 : index
    %8 = vector.load %arg2[%c0_3, %c0_4, %c0_5] : memref<9x1x196xf32, #tpu.memory_space<vmem>>, vector<1x1x196xf32>
    %9 = vector.shape_cast %8 : vector<1x1x196xf32> to vector<1x196xf32>
    %10 = vector.broadcast %9 : vector<1x196xf32> to vector<32x196xf32>
    %11 = arith.mulf %7, %10 : vector<32x196xf32>
    %12 = arith.addf %3, %11 : vector<32x196xf32>
    %13 = vector.extract_strided_slice %2 {offsets = [32, 0], sizes = [32, 196], strides = [1, 1]} : vector<288x196xf32> to vector<32x196xf32>
    %14 = vector.extract_strided_slice %13 {offsets = [0, 182], sizes = [32, 14], strides = [1, 1]} : vector<32x196xf32> to vector<32x14xf32>
    %15 = vector.extract_strided_slice %13 {offsets = [0, 0], sizes = [32, 182], strides = [1, 1]} : vector<32x196xf32> to vector<32x182xf32>
    %16 = tpu.concatenate %14, %15 in 1 : vector<32x14xf32>, vector<32x182xf32> -> vector<32x196xf32>
    %c1 = arith.constant 1 : index
    %c0_6 = arith.constant 0 : index
    %c0_7 = arith.constant 0 : index
    %17 = vector.load %arg2[%c1, %c0_6, %c0_7] : memref<9x1x196xf32, #tpu.memory_space<vmem>>, vector<1x1x196xf32>
    %18 = vector.shape_cast %17 : vector<1x1x196xf32> to vector<1x196xf32>
    %19 = vector.broadcast %18 : vector<1x196xf32> to vector<32x196xf32>
    %20 = arith.mulf %16, %19 : vector<32x196xf32>
    %21 = arith.addf %12, %20 : vector<32x196xf32>
    %22 = vector.extract_strided_slice %2 {offsets = [64, 0], sizes = [32, 196], strides = [1, 1]} : vector<288x196xf32> to vector<32x196xf32>
    %23 = vector.extract_strided_slice %22 {offsets = [0, 183], sizes = [32, 13], strides = [1, 1]} : vector<32x196xf32> to vector<32x13xf32>
    %24 = vector.extract_strided_slice %22 {offsets = [0, 0], sizes = [32, 183], strides = [1, 1]} : vector<32x196xf32> to vector<32x183xf32>
    %25 = tpu.concatenate %23, %24 in 1 : vector<32x13xf32>, vector<32x183xf32> -> vector<32x196xf32>
    %c2 = arith.constant 2 : index
    %c0_8 = arith.constant 0 : index
    %c0_9 = arith.constant 0 : index
    %26 = vector.load %arg2[%c2, %c0_8, %c0_9] : memref<9x1x196xf32, #tpu.memory_space<vmem>>, vector<1x1x196xf32>
    %27 = vector.shape_cast %26 : vector<1x1x196xf32> to vector<1x196xf32>
    %28 = vector.broadcast %27 : vector<1x196xf32> to vector<32x196xf32>
    %29 = arith.mulf %25, %28 : vector<32x196xf32>
    %30 = arith.addf %21, %29 : vector<32x196xf32>
    %31 = vector.extract_strided_slice %2 {offsets = [96, 0], sizes = [32, 196], strides = [1, 1]} : vector<288x196xf32> to vector<32x196xf32>
    %32 = vector.extract_strided_slice %31 {offsets = [0, 195], sizes = [32, 1], strides = [1, 1]} : vector<32x196xf32> to vector<32x1xf32>
    %33 = vector.extract_strided_slice %31 {offsets = [0, 0], sizes = [32, 195], strides = [1, 1]} : vector<32x196xf32> to vector<32x195xf32>
    %34 = tpu.concatenate %32, %33 in 1 : vector<32x1xf32>, vector<32x195xf32> -> vector<32x196xf32>
    %c3 = arith.constant 3 : index
    %c0_10 = arith.constant 0 : index
    %c0_11 = arith.constant 0 : index
    %35 = vector.load %arg2[%c3, %c0_10, %c0_11] : memref<9x1x196xf32, #tpu.memory_space<vmem>>, vector<1x1x196xf32>
    %36 = vector.shape_cast %35 : vector<1x1x196xf32> to vector<1x196xf32>
    %37 = vector.broadcast %36 : vector<1x196xf32> to vector<32x196xf32>
    %38 = arith.mulf %34, %37 : vector<32x196xf32>
    %39 = arith.addf %30, %38 : vector<32x196xf32>
    %40 = vector.extract_strided_slice %2 {offsets = [160, 0], sizes = [32, 196], strides = [1, 1]} : vector<288x196xf32> to vector<32x196xf32>
    %41 = vector.extract_strided_slice %40 {offsets = [0, 1], sizes = [32, 195], strides = [1, 1]} : vector<32x196xf32> to vector<32x195xf32>
    %42 = vector.extract_strided_slice %40 {offsets = [0, 0], sizes = [32, 1], strides = [1, 1]} : vector<32x196xf32> to vector<32x1xf32>
    %43 = tpu.concatenate %41, %42 in 1 : vector<32x195xf32>, vector<32x1xf32> -> vector<32x196xf32>
    %c5 = arith.constant 5 : index
    %c0_12 = arith.constant 0 : index
    %c0_13 = arith.constant 0 : index
    %44 = vector.load %arg2[%c5, %c0_12, %c0_13] : memref<9x1x196xf32, #tpu.memory_space<vmem>>, vector<1x1x196xf32>
    %45 = vector.shape_cast %44 : vector<1x1x196xf32> to vector<1x196xf32>
    %46 = vector.broadcast %45 : vector<1x196xf32> to vector<32x196xf32>
    %47 = arith.mulf %43, %46 : vector<32x196xf32>
    %48 = arith.addf %39, %47 : vector<32x196xf32>
    %49 = vector.extract_strided_slice %2 {offsets = [192, 0], sizes = [32, 196], strides = [1, 1]} : vector<288x196xf32> to vector<32x196xf32>
    %50 = vector.extract_strided_slice %49 {offsets = [0, 13], sizes = [32, 183], strides = [1, 1]} : vector<32x196xf32> to vector<32x183xf32>
    %51 = vector.extract_strided_slice %49 {offsets = [0, 0], sizes = [32, 13], strides = [1, 1]} : vector<32x196xf32> to vector<32x13xf32>
    %52 = tpu.concatenate %50, %51 in 1 : vector<32x183xf32>, vector<32x13xf32> -> vector<32x196xf32>
    %c6 = arith.constant 6 : index
    %c0_14 = arith.constant 0 : index
    %c0_15 = arith.constant 0 : index
    %53 = vector.load %arg2[%c6, %c0_14, %c0_15] : memref<9x1x196xf32, #tpu.memory_space<vmem>>, vector<1x1x196xf32>
    %54 = vector.shape_cast %53 : vector<1x1x196xf32> to vector<1x196xf32>
    %55 = vector.broadcast %54 : vector<1x196xf32> to vector<32x196xf32>
    %56 = arith.mulf %52, %55 : vector<32x196xf32>
    %57 = arith.addf %48, %56 : vector<32x196xf32>
    %58 = vector.extract_strided_slice %2 {offsets = [224, 0], sizes = [32, 196], strides = [1, 1]} : vector<288x196xf32> to vector<32x196xf32>
    %59 = vector.extract_strided_slice %58 {offsets = [0, 14], sizes = [32, 182], strides = [1, 1]} : vector<32x196xf32> to vector<32x182xf32>
    %60 = vector.extract_strided_slice %58 {offsets = [0, 0], sizes = [32, 14], strides = [1, 1]} : vector<32x196xf32> to vector<32x14xf32>
    %61 = tpu.concatenate %59, %60 in 1 : vector<32x182xf32>, vector<32x14xf32> -> vector<32x196xf32>
    %c7 = arith.constant 7 : index
    %c0_16 = arith.constant 0 : index
    %c0_17 = arith.constant 0 : index
    %62 = vector.load %arg2[%c7, %c0_16, %c0_17] : memref<9x1x196xf32, #tpu.memory_space<vmem>>, vector<1x1x196xf32>
    %63 = vector.shape_cast %62 : vector<1x1x196xf32> to vector<1x196xf32>
    %64 = vector.broadcast %63 : vector<1x196xf32> to vector<32x196xf32>
    %65 = arith.mulf %61, %64 : vector<32x196xf32>
    %66 = arith.addf %57, %65 : vector<32x196xf32>
    %67 = vector.extract_strided_slice %2 {offsets = [256, 0], sizes = [32, 196], strides = [1, 1]} : vector<288x196xf32> to vector<32x196xf32>
    %68 = vector.extract_strided_slice %67 {offsets = [0, 15], sizes = [32, 181], strides = [1, 1]} : vector<32x196xf32> to vector<32x181xf32>
    %69 = vector.extract_strided_slice %67 {offsets = [0, 0], sizes = [32, 15], strides = [1, 1]} : vector<32x196xf32> to vector<32x15xf32>
    %70 = tpu.concatenate %68, %69 in 1 : vector<32x181xf32>, vector<32x15xf32> -> vector<32x196xf32>
    %c8 = arith.constant 8 : index
    %c0_18 = arith.constant 0 : index
    %c0_19 = arith.constant 0 : index
    %71 = vector.load %arg2[%c8, %c0_18, %c0_19] : memref<9x1x196xf32, #tpu.memory_space<vmem>>, vector<1x1x196xf32>
    %72 = vector.shape_cast %71 : vector<1x1x196xf32> to vector<1x196xf32>
    %73 = vector.broadcast %72 : vector<1x196xf32> to vector<32x196xf32>
    %74 = arith.mulf %70, %73 : vector<32x196xf32>
    %75 = arith.addf %66, %74 : vector<32x196xf32>
    %c0_20 = arith.constant 0 : index
    %c0_21 = arith.constant 0 : index
    %76 = vector.load %arg3[%c0_20, %c0_21] : memref<256x196xf32, #tpu.memory_space<vmem>>, vector<256x196xf32>
    %c0_22 = arith.constant 0 : index
    %c0_23 = arith.constant 0 : index
    %77 = vector.load %arg19[%c0_22, %c0_23] : memref<768x196xf32, #tpu.memory_space<vmem>>, vector<256x196xf32>
    tpu.vector_store %arg19[%c0_22, %c0_23], %76 {strides = array<i32>} : memref<768x196xf32, #tpu.memory_space<vmem>>, vector<256x196xf32>,
    %c0_24 = arith.constant 0 : index
    %c0_25 = arith.constant 0 : index
    %78 = vector.load %arg4[%c0_24, %c0_25] : memref<32x196xf32, #tpu.memory_space<vmem>>, vector<32x196xf32>
    %c256 = arith.constant 256 : index
    %c0_26 = arith.constant 0 : index
    %79 = vector.load %arg19[%c256, %c0_26] : memref<768x196xf32, #tpu.memory_space<vmem>>, vector<32x196xf32>
    tpu.vector_store %arg19[%c256, %c0_26], %78 {strides = array<i32>} : memref<768x196xf32, #tpu.memory_space<vmem>>, vector<32x196xf32>,
    %c0_27 = arith.constant 0 : index
    %c0_28 = arith.constant 0 : index
    %80 = vector.load %arg5[%c0_27, %c0_28] : memref<32x196xf32, #tpu.memory_space<vmem>>, vector<32x196xf32>
    %c288 = arith.constant 288 : index
    %c0_29 = arith.constant 0 : index
    %81 = vector.load %arg19[%c288, %c0_29] : memref<768x196xf32, #tpu.memory_space<vmem>>, vector<32x196xf32>
    tpu.vector_store %arg19[%c288, %c0_29], %80 {strides = array<i32>} : memref<768x196xf32, #tpu.memory_space<vmem>>, vector<32x196xf32>,
    %c0_30 = arith.constant 0 : index
    %c0_31 = arith.constant 0 : index
    %82 = vector.load %arg6[%c0_30, %c0_31] : memref<32x196xf32, #tpu.memory_space<vmem>>, vector<32x196xf32>
    %c320 = arith.constant 320 : index
    %c0_32 = arith.constant 0 : index
    %83 = vector.load %arg19[%c320, %c0_32] : memref<768x196xf32, #tpu.memory_space<vmem>>, vector<32x196xf32>
    tpu.vector_store %arg19[%c320, %c0_32], %82 {strides = array<i32>} : memref<768x196xf32, #tpu.memory_space<vmem>>, vector<32x196xf32>,
    %c0_33 = arith.constant 0 : index
    %c0_34 = arith.constant 0 : index
    %84 = vector.load %arg7[%c0_33, %c0_34] : memref<32x196xf32, #tpu.memory_space<vmem>>, vector<32x196xf32>
    %c352 = arith.constant 352 : index
    %c0_35 = arith.constant 0 : index
    %85 = vector.load %arg19[%c352, %c0_35] : memref<768x196xf32, #tpu.memory_space<vmem>>, vector<32x196xf32>
    tpu.vector_store %arg19[%c352, %c0_35], %84 {strides = array<i32>} : memref<768x196xf32, #tpu.memory_space<vmem>>, vector<32x196xf32>,
    %c0_36 = arith.constant 0 : index
    %c0_37 = arith.constant 0 : index
    %86 = vector.load %arg8[%c0_36, %c0_37] : memref<32x196xf32, #tpu.memory_space<vmem>>, vector<32x196xf32>
    %c384 = arith.constant 384 : index
    %c0_38 = arith.constant 0 : index
    %87 = vector.load %arg19[%c384, %c0_38] : memref<768x196xf32, #tpu.memory_space<vmem>>, vector<32x196xf32>
    tpu.vector_store %arg19[%c384, %c0_38], %86 {strides = array<i32>} : memref<768x196xf32, #tpu.memory_space<vmem>>, vector<32x196xf32>,
    %c0_39 = arith.constant 0 : index
    %c0_40 = arith.constant 0 : index
    %88 = vector.load %arg9[%c0_39, %c0_40] : memref<32x196xf32, #tpu.memory_space<vmem>>, vector<32x196xf32>
    %c416 = arith.constant 416 : index
    %c0_41 = arith.constant 0 : index
    %89 = vector.load %arg19[%c416, %c0_41] : memref<768x196xf32, #tpu.memory_space<vmem>>, vector<32x196xf32>
    tpu.vector_store %arg19[%c416, %c0_41], %88 {strides = array<i32>} : memref<768x196xf32, #tpu.memory_space<vmem>>, vector<32x196xf32>,
    %c0_42 = arith.constant 0 : index
    %c0_43 = arith.constant 0 : index
    %90 = vector.load %arg10[%c0_42, %c0_43] : memref<32x196xf32, #tpu.memory_space<vmem>>, vector<32x196xf32>
    %c448 = arith.constant 448 : index
    %c0_44 = arith.constant 0 : index
    %91 = vector.load %arg19[%c448, %c0_44] : memref<768x196xf32, #tpu.memory_space<vmem>>, vector<32x196xf32>
    tpu.vector_store %arg19[%c448, %c0_44], %90 {strides = array<i32>} : memref<768x196xf32, #tpu.memory_space<vmem>>, vector<32x196xf32>,
    %c0_45 = arith.constant 0 : index
    %c0_46 = arith.constant 0 : index
    %92 = vector.load %arg11[%c0_45, %c0_46] : memref<32x196xf32, #tpu.memory_space<vmem>>, vector<32x196xf32>
    %c480 = arith.constant 480 : index
    %c0_47 = arith.constant 0 : index
    %93 = vector.load %arg19[%c480, %c0_47] : memref<768x196xf32, #tpu.memory_space<vmem>>, vector<32x196xf32>
    tpu.vector_store %arg19[%c480, %c0_47], %92 {strides = array<i32>} : memref<768x196xf32, #tpu.memory_space<vmem>>, vector<32x196xf32>,
    %c0_48 = arith.constant 0 : index
    %c0_49 = arith.constant 0 : index
    %94 = vector.load %arg12[%c0_48, %c0_49] : memref<32x196xf32, #tpu.memory_space<vmem>>, vector<32x196xf32>
    %c512 = arith.constant 512 : index
    %c0_50 = arith.constant 0 : index
    %95 = vector.load %arg19[%c512, %c0_50] : memref<768x196xf32, #tpu.memory_space<vmem>>, vector<32x196xf32>
    tpu.vector_store %arg19[%c512, %c0_50], %94 {strides = array<i32>} : memref<768x196xf32, #tpu.memory_space<vmem>>, vector<32x196xf32>,
    %c0_51 = arith.constant 0 : index
    %c0_52 = arith.constant 0 : index
    %96 = vector.load %arg13[%c0_51, %c0_52] : memref<32x196xf32, #tpu.memory_space<vmem>>, vector<32x196xf32>
    %c544 = arith.constant 544 : index
    %c0_53 = arith.constant 0 : index
    %97 = vector.load %arg19[%c544, %c0_53] : memref<768x196xf32, #tpu.memory_space<vmem>>, vector<32x196xf32>
    tpu.vector_store %arg19[%c544, %c0_53], %96 {strides = array<i32>} : memref<768x196xf32, #tpu.memory_space<vmem>>, vector<32x196xf32>,
    %c0_54 = arith.constant 0 : index
    %c0_55 = arith.constant 0 : index
    %98 = vector.load %arg14[%c0_54, %c0_55] : memref<32x196xf32, #tpu.memory_space<vmem>>, vector<32x196xf32>
    %c576 = arith.constant 576 : index
    %c0_56 = arith.constant 0 : index
    %99 = vector.load %arg19[%c576, %c0_56] : memref<768x196xf32, #tpu.memory_space<vmem>>, vector<32x196xf32>
    tpu.vector_store %arg19[%c576, %c0_56], %98 {strides = array<i32>} : memref<768x196xf32, #tpu.memory_space<vmem>>, vector<32x196xf32>,
    %c0_57 = arith.constant 0 : index
    %c0_58 = arith.constant 0 : index
    %100 = vector.load %arg15[%c0_57, %c0_58] : memref<32x196xf32, #tpu.memory_space<vmem>>, vector<32x196xf32>
    %c608 = arith.constant 608 : index
    %c0_59 = arith.constant 0 : index
    %101 = vector.load %arg19[%c608, %c0_59] : memref<768x196xf32, #tpu.memory_space<vmem>>, vector<32x196xf32>
    tpu.vector_store %arg19[%c608, %c0_59], %100 {strides = array<i32>} : memref<768x196xf32, #tpu.memory_space<vmem>>, vector<32x196xf32>,
    %c0_60 = arith.constant 0 : index
    %c0_61 = arith.constant 0 : index
    %102 = vector.load %arg16[%c0_60, %c0_61] : memref<32x196xf32, #tpu.memory_space<vmem>>, vector<32x196xf32>
    %c640 = arith.constant 640 : index
    %c0_62 = arith.constant 0 : index
    %103 = vector.load %arg19[%c640, %c0_62] : memref<768x196xf32, #tpu.memory_space<vmem>>, vector<32x196xf32>
    tpu.vector_store %arg19[%c640, %c0_62], %102 {strides = array<i32>} : memref<768x196xf32, #tpu.memory_space<vmem>>, vector<32x196xf32>,
    %c0_63 = arith.constant 0 : index
    %c0_64 = arith.constant 0 : index
    %104 = vector.load %arg17[%c0_63, %c0_64] : memref<32x196xf32, #tpu.memory_space<vmem>>, vector<32x196xf32>
    %c672 = arith.constant 672 : index
    %c0_65 = arith.constant 0 : index
    %105 = vector.load %arg19[%c672, %c0_65] : memref<768x196xf32, #tpu.memory_space<vmem>>, vector<32x196xf32>
    tpu.vector_store %arg19[%c672, %c0_65], %104 {strides = array<i32>} : memref<768x196xf32, #tpu.memory_space<vmem>>, vector<32x196xf32>,
    %c704 = arith.constant 704 : index
    %c0_66 = arith.constant 0 : index
    %106 = vector.load %arg19[%c704, %c0_66] : memref<768x196xf32, #tpu.memory_space<vmem>>, vector<32x196xf32>
    tpu.vector_store %arg19[%c704, %c0_66], %75 {strides = array<i32>} : memref<768x196xf32, #tpu.memory_space<vmem>>, vector<32x196xf32>,
    %c0_67 = arith.constant 0 : index
    %c0_68 = arith.constant 0 : index
    %107 = vector.load %arg18[%c0_67, %c0_68] : memref<32x196xf32, #tpu.memory_space<vmem>>, vector<32x196xf32>
    %c736 = arith.constant 736 : index
    %c0_69 = arith.constant 0 : index
    %108 = vector.load %arg19[%c736, %c0_69] : memref<768x196xf32, #tpu.memory_space<vmem>>, vector<32x196xf32>
    tpu.vector_store %arg19[%c736, %c0_69], %107 {strides = array<i32>} : memref<768x196xf32, #tpu.memory_space<vmem>>, vector<32x196xf32>,
    return
  }
}

</mosaic_0001>

<llo_original>
// kernel: fused_conv_cat.1
$region0: #{fused_conv_cat.1}
  #allocation0 [shape = 'u32[]', space=smem, size = 0x4, offset = 0x4, fixed_abs, tag = 'smem constant byte address 0x4 - core index']
  #allocation1 [shape = 'u32[144,128]{1,0:T(1,128)}', space=vmem, size = 0x12000, scoped, tag = 'internal scratch']
  %s0 = inlined_call_operand.vmem [shape: f32[128,196], index: 0, kind: input, shape index: {}]
  %s1 = inlined_call_operand.vmem [shape: f32[288,128], index: 1, kind: input, shape index: {}]
  %s2 = inlined_call_operand.vmem [shape: f32[9,1,196], index: 2, kind: input, shape index: {}]
  %s3 = inlined_call_operand.vmem [shape: f32[256,196], index: 3, kind: input, shape index: {}]
  %s4 = inlined_call_operand.vmem [shape: f32[32,196], index: 4, kind: input, shape index: {}]
  %s5 = inlined_call_operand.vmem [shape: f32[32,196], index: 5, kind: input, shape index: {}]
  %s6 = inlined_call_operand.vmem [shape: f32[32,196], index: 6, kind: input, shape index: {}]
  %s7 = inlined_call_operand.vmem [shape: f32[32,196], index: 7, kind: input, shape index: {}]
  %s8 = inlined_call_operand.vmem [shape: f32[32,196], index: 8, kind: input, shape index: {}]
  %s9 = inlined_call_operand.vmem [shape: f32[32,196], index: 9, kind: input, shape index: {}]
  %s10 = inlined_call_operand.vmem [shape: f32[32,196], index: 10, kind: input, shape index: {}]
  %s11 = inlined_call_operand.vmem [shape: f32[32,196], index: 11, kind: input, shape index: {}]
  %s12 = inlined_call_operand.vmem [shape: f32[32,196], index: 12, kind: input, shape index: {}]
  %s13 = inlined_call_operand.vmem [shape: f32[32,196], index: 13, kind: input, shape index: {}]
  %s14 = inlined_call_operand.vmem [shape: f32[32,196], index: 14, kind: input, shape index: {}]
  %s15 = inlined_call_operand.vmem [shape: f32[32,196], index: 15, kind: input, shape index: {}]
  %s16 = inlined_call_operand.vmem [shape: f32[32,196], index: 16, kind: input, shape index: {}]
  %s17 = inlined_call_operand.vmem [shape: f32[32,196], index: 17, kind: input, shape index: {}]
  %s18 = inlined_call_operand.vmem [shape: f32[32,196], index: 18, kind: input, shape index: {}]
  %s19 = inlined_call_operand.vmem [shape: f32[768,196], index: 19, kind: output, shape index: {}]
  %s20 = sld [smem:[#allocation0]]
  $region86: #{fused_conv_cat.1} parent=0
    _
  %s22 = ssub.s32 1, %s20
  %s23 = scalar_select 0, %s22, %s20
  // Predicated region
  $region2: #{fused_conv_cat.1} parent=0 // pred_check
    _
  $region3: #{fused_conv_cat.1} parent=0 // pred_check_branch
    %25 = sbr.rel (0) target = $region5
  $region4: #{fused_conv_cat.1} parent=0 // pred_region
    _
  $region5: #{fused_conv_cat.1} parent=0 // pred_fallthru
    _
  // Predicated region
  $region6: #{fused_conv_cat.1} parent=0 // pred_check
    _
  $region7: #{fused_conv_cat.1} parent=0 // pred_check_branch
    %27 = sbr.rel (0) target = $region9
  $region8: #{fused_conv_cat.1} parent=0 // pred_region
    _
  $region9: #{fused_conv_cat.1} parent=0 // pred_fallthru
    _
  // Predicated region
  $region10: #{fused_conv_cat.1} parent=0 // pred_check
    _
  $region11: #{fused_conv_cat.1} parent=0 // pred_check_branch
    %29 = sbr.rel (0) target = $region13
  $region12: #{fused_conv_cat.1} parent=0 // pred_region
    _
  $region13: #{fused_conv_cat.1} parent=0 // pred_fallthru
    _
  // Predicated region
  $region14: #{fused_conv_cat.1} parent=0 // pred_check
    _
  $region15: #{fused_conv_cat.1} parent=0 // pred_check_branch
    %31 = sbr.rel (0) target = $region17
  $region16: #{fused_conv_cat.1} parent=0 // pred_region
    _
  $region17: #{fused_conv_cat.1} parent=0 // pred_fallthru
    _
  // Predicated region
  $region18: #{fused_conv_cat.1} parent=0 // pred_check
    _
  $region19: #{fused_conv_cat.1} parent=0 // pred_check_branch
    %33 = sbr.rel (0) target = $region21
  $region20: #{fused_conv_cat.1} parent=0 // pred_region
    _
  $region21: #{fused_conv_cat.1} parent=0 // pred_fallthru
    _
  // Predicated region
  $region22: #{fused_conv_cat.1} parent=0 // pred_check
    _
  $region23: #{fused_conv_cat.1} parent=0 // pred_check_branch
    %35 = sbr.rel (0) target = $region25
  $region24: #{fused_conv_cat.1} parent=0 // pred_region
    _
  $region25: #{fused_conv_cat.1} parent=0 // pred_fallthru
    _
  // Predicated region
  $region26: #{fused_conv_cat.1} parent=0 // pred_check
    _
  $region27: #{fused_conv_cat.1} parent=0 // pred_check_branch
    %37 = sbr.rel (0) target = $region29
  $region28: #{fused_conv_cat.1} parent=0 // pred_region
    _
  $region29: #{fused_conv_cat.1} parent=0 // pred_fallthru
    _
  // Predicated region
  $region30: #{fused_conv_cat.1} parent=0 // pred_check
    _
  $region31: #{fused_conv_cat.1} parent=0 // pred_check_branch
    %39 = sbr.rel (0) target = $region33
  $region32: #{fused_conv_cat.1} parent=0 // pred_region
    _
  $region33: #{fused_conv_cat.1} parent=0 // pred_fallthru
    _
  // Predicated region
  $region34: #{fused_conv_cat.1} parent=0 // pred_check
    _
  $region35: #{fused_conv_cat.1} parent=0 // pred_check_branch
    %41 = sbr.rel (0) target = $region37
  $region36: #{fused_conv_cat.1} parent=0 // pred_region
    _
  $region37: #{fused_conv_cat.1} parent=0 // pred_fallthru
    _
  // Predicated region
  $region38: #{fused_conv_cat.1} parent=0 // pred_check
    _
  $region39: #{fused_conv_cat.1} parent=0 // pred_check_branch
    %43 = sbr.rel (0) target = $region41
  $region40: #{fused_conv_cat.1} parent=0 // pred_region
    _
  $region41: #{fused_conv_cat.1} parent=0 // pred_fallthru
    _
  // Predicated region
  $region42: #{fused_conv_cat.1} parent=0 // pred_check
    _
  $region43: #{fused_conv_cat.1} parent=0 // pred_check_branch
    %45 = sbr.rel (0) target = $region45
  $region44: #{fused_conv_cat.1} parent=0 // pred_region
    _
  $region45: #{fused_conv_cat.1} parent=0 // pred_fallthru
    _
  // Predicated region
  $region46: #{fused_conv_cat.1} parent=0 // pred_check
    _
  $region47: #{fused_conv_cat.1} parent=0 // pred_check_branch
    %47 = sbr.rel (0) target = $region49
  $region48: #{fused_conv_cat.1} parent=0 // pred_region
    _
  $region49: #{fused_conv_cat.1} parent=0 // pred_fallthru
    _
  // Predicated region
  $region50: #{fused_conv_cat.1} parent=0 // pred_check
    _
  $region51: #{fused_conv_cat.1} parent=0 // pred_check_branch
    %49 = sbr.rel (0) target = $region53
  $region52: #{fused_conv_cat.1} parent=0 // pred_region
    _
  $region53: #{fused_conv_cat.1} parent=0 // pred_fallthru
    _
  // Predicated region
  $region54: #{fused_conv_cat.1} parent=0 // pred_check
    _
  $region55: #{fused_conv_cat.1} parent=0 // pred_check_branch
    %51 = sbr.rel (0) target = $region57
  $region56: #{fused_conv_cat.1} parent=0 // pred_region
    _
  $region57: #{fused_conv_cat.1} parent=0 // pred_fallthru
    _
  // Predicated region
  $region58: #{fused_conv_cat.1} parent=0 // pred_check
    _
  $region59: #{fused_conv_cat.1} parent=0 // pred_check_branch
    %53 = sbr.rel (0) target = $region61
  $region60: #{fused_conv_cat.1} parent=0 // pred_region
    _
  $region61: #{fused_conv_cat.1} parent=0 // pred_fallthru
    _
  // Predicated region
  $region62: #{fused_conv_cat.1} parent=0 // pred_check
    _
  $region63: #{fused_conv_cat.1} parent=0 // pred_check_branch
    %55 = sbr.rel (0) target = $region65
  $region64: #{fused_conv_cat.1} parent=0 // pred_region
    _
  $region65: #{fused_conv_cat.1} parent=0 // pred_fallthru
    _
  // Predicated region
  $region66: #{fused_conv_cat.1} parent=0 // pred_check
    _
  $region67: #{fused_conv_cat.1} parent=0 // pred_check_branch
    %57 = sbr.rel (0) target = $region69
  $region68: #{fused_conv_cat.1} parent=0 // pred_region
    _
  $region69: #{fused_conv_cat.1} parent=0 // pred_fallthru
    _
  // Predicated region
  $region70: #{fused_conv_cat.1} parent=0 // pred_check
    _
  $region71: #{fused_conv_cat.1} parent=0 // pred_check_branch
    %59 = sbr.rel (0) target = $region73
  $region72: #{fused_conv_cat.1} parent=0 // pred_region
    _
  $region73: #{fused_conv_cat.1} parent=0 // pred_fallthru
    _
  // Predicated region
  $region74: #{fused_conv_cat.1} parent=0 // pred_check
    _
  $region75: #{fused_conv_cat.1} parent=0 // pred_check_branch
    %61 = sbr.rel (0) target = $region77
  $region76: #{fused_conv_cat.1} parent=0 // pred_region
    _
  $region77: #{fused_conv_cat.1} parent=0 // pred_fallthru
    _
  %v62 = vld [vmem:[%s0] sm:$0xff]
  %v63 = vld [vmem:[%s0 + $0x8] sm:$0xff]
  %v64 = vld [vmem:[%s0 + $0x10] sm:$0xff]
  %v65 = vld [vmem:[%s0 + $0x18] sm:$0xff]
  %v66 = vld [vmem:[%s0 + $0x20] sm:$0xff]
  %v67 = vld [vmem:[%s0 + $0x28] sm:$0xff]
  %v68 = vld [vmem:[%s0 + $0x30] sm:$0xff]
  %v69 = vld [vmem:[%s0 + $0x38] sm:$0xff]
  %v70 = vld [vmem:[%s0 + $0x40] sm:$0xff]
  %v71 = vld [vmem:[%s0 + $0x48] sm:$0xff]
  %v72 = vld [vmem:[%s0 + $0x50] sm:$0xff]
  %v73 = vld [vmem:[%s0 + $0x58] sm:$0xff]
  %v74 = vld [vmem:[%s0 + $0x60] sm:$0xff]
  %v75 = vld [vmem:[%s0 + $0x68] sm:$0xff]
  %v76 = vld [vmem:[%s0 + $0x70] sm:$0xff]
  %v77 = vld [vmem:[%s0 + $0x78] sm:$0xff]
  %v78 = vld [vmem:[%s0 + $0x80] sm:$0xff]
  %v79 = vld [vmem:[%s0 + $0x88] sm:$0xff]
  %v80 = vld [vmem:[%s0 + $0x90] sm:$0xff]
  %v81 = vld [vmem:[%s0 + $0x98] sm:$0xff]
  %v82 = vld [vmem:[%s0 + $0xa0] sm:$0xff]
  %v83 = vld [vmem:[%s0 + $0xa8] sm:$0xff]
  %v84 = vld [vmem:[%s0 + $0xb0] sm:$0xff]
  %v85 = vld [vmem:[%s0 + $0xb8] sm:$0xff]
  %v86 = vld [vmem:[%s0 + $0xc0] sm:$0xff]
  %v87 = vld [vmem:[%s0 + $0xc8] sm:$0xff]
  %v88 = vld [vmem:[%s0 + $0xd0] sm:$0xff]
  %v89 = vld [vmem:[%s0 + $0xd8] sm:$0xff]
  %v90 = vld [vmem:[%s0 + $0xe0] sm:$0xff]
  %v91 = vld [vmem:[%s0 + $0xe8] sm:$0xff]
  %v92 = vld [vmem:[%s0 + $0xf0] sm:$0xff]
  %v93 = vld [vmem:[%s0 + $0xf8] sm:$0xff]
  %v94 = vld [vmem:[%s1] sm:$0xff]
  %v95 = vld [vmem:[%s1 + $0x8] sm:$0xff]
  %v96 = vld [vmem:[%s1 + $0x10] sm:$0xff]
  %v97 = vld [vmem:[%s1 + $0x18] sm:$0xff]
  %v98 = vld [vmem:[%s1 + $0x20] sm:$0xff]
  %v99 = vld [vmem:[%s1 + $0x28] sm:$0xff]
  %v100 = vld [vmem:[%s1 + $0x30] sm:$0xff]
  %v101 = vld [vmem:[%s1 + $0x38] sm:$0xff]
  %v102 = vld [vmem:[%s1 + $0x40] sm:$0xff]
  %v103 = vld [vmem:[%s1 + $0x48] sm:$0xff]
  %v104 = vld [vmem:[%s1 + $0x50] sm:$0xff]
  %v105 = vld [vmem:[%s1 + $0x58] sm:$0xff]
  %v106 = vld [vmem:[%s1 + $0x60] sm:$0xff]
  %v107 = vld [vmem:[%s1 + $0x68] sm:$0xff]
  %v108 = vld [vmem:[%s1 + $0x70] sm:$0xff]
  %v109 = vld [vmem:[%s1 + $0x78] sm:$0xff]
  %v110 = vld [vmem:[%s1 + $0x80] sm:$0xff]
  %v111 = vld [vmem:[%s1 + $0x88] sm:$0xff]
  %v112 = vld [vmem:[%s1 + $0x90] sm:$0xff]
  %v113 = vld [vmem:[%s1 + $0x98] sm:$0xff]
  %v114 = vld [vmem:[%s1 + $0xa0] sm:$0xff]
  %v115 = vld [vmem:[%s1 + $0xa8] sm:$0xff]
  %v116 = vld [vmem:[%s1 + $0xb0] sm:$0xff]
  %v117 = vld [vmem:[%s1 + $0xb8] sm:$0xff]
  %v118 = vld [vmem:[%s1 + $0xc0] sm:$0xff]
  %v119 = vld [vmem:[%s1 + $0xc8] sm:$0xff]
  %v120 = vld [vmem:[%s1 + $0xd0] sm:$0xff]
  %v121 = vld [vmem:[%s1 + $0xd8] sm:$0xff]
  %v122 = vld [vmem:[%s1 + $0xe0] sm:$0xff]
  %v123 = vld [vmem:[%s1 + $0xe8] sm:$0xff]
  %v124 = vld [vmem:[%s1 + $0xf0] sm:$0xff]
  %v125 = vld [vmem:[%s1 + $0xf8] sm:$0xff]
  %v126 = vld [vmem:[%s1 + $0x100] sm:$0xff]
  %v127 = vld [vmem:[%s1 + $0x108] sm:$0xff]
  %v128 = vld [vmem:[%s1 + $0x110] sm:$0xff]
  %v129 = vld [vmem:[%s1 + $0x118] sm:$0xff]
  %130 = vmatprep.subr.mxu0 %v63
  %131 = vmatpush1.msra.mxu0 %v62
  %132 = vmatprep.subr.mxu0 %v65
  %133 = vmatpush1.msra.mxu0 %v64
  %134 = vmatprep.subr.mxu0 %v67
  %135 = vmatpush1.msra.mxu0 %v66
  %136 = vmatprep.subr.mxu0 %v69
  %137 = vmatpush1.msra.mxu0 %v68
  %138 = vmatprep.subr.mxu0 %v71
  %139 = vmatpush1.msra.mxu0 %v70
  %140 = vmatprep.subr.mxu0 %v73
  %141 = vmatpush1.msra.mxu0 %v72
  %142 = vmatprep.subr.mxu0 %v75
  %143 = vmatpush1.msra.mxu0 %v74
  %144 = vmatprep.subr.mxu0 %v77
  %145 = vmatpush1.msra.mxu0 %v76
  %146 = vmatprep.subr.mxu0 %v79
  %147 = vmatpush1.msra.mxu0 %v78
  %148 = vmatprep.subr.mxu0 %v81
  %149 = vmatpush1.msra.mxu0 %v80
  %150 = vmatprep.subr.mxu0 %v83
  %151 = vmatpush1.msra.mxu0 %v82
  %152 = vmatprep.subr.mxu0 %v85
  %153 = vmatpush1.msra.mxu0 %v84
  %154 = vmatprep.subr.mxu0 %v87
  %155 = vmatpush1.msra.mxu0 %v86
  %156 = vmatprep.subr.mxu0 %v89
  %157 = vmatpush1.msra.mxu0 %v88
  %158 = vmatprep.subr.mxu0 %v91
  %159 = vmatpush1.msra.mxu0 %v90
  %160 = vmatprep.subr.mxu0 %v93
  %161 = vmatpush1.msra.mxu0 %v92
  %162 = vmatprep.subr.mxu0 0.0
  %163 = vmatpush1.msra.mxu0 0.0
  %164 = vmatprep.subr.mxu0 0.0
  %165 = vmatpush1.msra.mxu0 0.0
  %166 = vmatprep.subr.mxu0 0.0
  %167 = vmatpush1.msra.mxu0 0.0
  %168 = vmatprep.subr.mxu0 0.0
  %169 = vmatpush1.msra.mxu0 0.0
  %170 = vmatprep.subr.mxu0 0.0
  %171 = vmatpush1.msra.mxu0 0.0
  %172 = vmatprep.subr.mxu0 0.0
  %173 = vmatpush1.msra.mxu0 0.0
  %174 = vmatprep.subr.mxu0 0.0
  %175 = vmatpush1.msra.mxu0 0.0
  %176 = vmatprep.subr.mxu0 0.0
  %177 = vmatpush1.msra.mxu0 0.0
  %178 = vmatprep.subr.mxu0 0.0
  %179 = vmatpush1.msra.mxu0 0.0
  %180 = vmatprep.subr.mxu0 0.0
  %181 = vmatpush1.msra.mxu0 0.0
  %182 = vmatprep.subr.mxu0 0.0
  %183 = vmatpush1.msra.mxu0 0.0
  %184 = vmatprep.subr.mxu0 0.0
  %185 = vmatpush1.msra.mxu0 0.0
  %186 = vmatprep.subr.mxu0 0.0
  %187 = vmatpush1.msra.mxu0 0.0
  %188 = vmatprep.subr.mxu0 0.0
  %189 = vmatpush1.msra.mxu0 0.0
  %190 = vmatprep.subr.mxu0 0.0
  %191 = vmatpush1.msra.mxu0 0.0
  %192 = vmatprep.subr.mxu0 0.0
  %193 = vmatpush1.msra.mxu0 0.0
  %194 = vmatprep.mubr.f32.mxu0 0.0
  %195 = vmatmul.mubr.f32.gmra.mrb[0].mxu0 %v94
  %v196 = vpop.f32.mrb[0].mxu0
  %v197 = vadd.f32 0.0, %v196
  %v198 = vpop.f32.mrb[0].mxu0
  %v199 = vadd.f32 0.0, %v198
  %200 = vmatprep.mubr.f32.mxu0 0.0
  %201 = vmatmul.mubr.f32.gmra.mrb[0].mxu0 %v95
  %v202 = vpop.f32.mrb[0].mxu0
  %v203 = vadd.f32 0.0, %v202
  %v204 = vpop.f32.mrb[0].mxu0
  %v205 = vadd.f32 0.0, %v204
  %206 = vmatprep.mubr.f32.mxu0 0.0
  %207 = vmatmul.mubr.f32.gmra.mrb[0].mxu0 %v96
  %v208 = vpop.f32.mrb[0].mxu0
  %v209 = vadd.f32 0.0, %v208
  %v210 = vpop.f32.mrb[0].mxu0
  %v211 = vadd.f32 0.0, %v210
  %212 = vmatprep.mubr.f32.mxu0 0.0
  %213 = vmatmul.mubr.f32.gmra.mrb[0].mxu0 %v97
  %v214 = vpop.f32.mrb[0].mxu0
  %v215 = vadd.f32 0.0, %v214
  %v216 = vpop.f32.mrb[0].mxu0
  %v217 = vadd.f32 0.0, %v216
  %218 = vmatprep.mubr.f32.mxu0 0.0
  %219 = vmatmul.mubr.f32.gmra.mrb[0].mxu0 %v98
  %v220 = vpop.f32.mrb[0].mxu0
  %v221 = vadd.f32 0.0, %v220
  %v222 = vpop.f32.mrb[0].mxu0
  %v223 = vadd.f32 0.0, %v222
  %224 = vmatprep.mubr.f32.mxu0 0.0
  %225 = vmatmul.mubr.f32.gmra.mrb[0].mxu0 %v99
  %v226 = vpop.f32.mrb[0].mxu0
  %v227 = vadd.f32 0.0, %v226
  %v228 = vpop.f32.mrb[0].mxu0
  %v229 = vadd.f32 0.0, %v228
  %230 = vmatprep.mubr.f32.mxu0 0.0
  %231 = vmatmul.mubr.f32.gmra.mrb[0].mxu0 %v100
  %v232 = vpop.f32.mrb[0].mxu0
  %v233 = vadd.f32 0.0, %v232
  %v234 = vpop.f32.mrb[0].mxu0
  %v235 = vadd.f32 0.0, %v234
  %236 = vmatprep.mubr.f32.mxu0 0.0
  %237 = vmatmul.mubr.f32.gmra.mrb[0].mxu0 %v101
  %v238 = vpop.f32.mrb[0].mxu0
  %v239 = vadd.f32 0.0, %v238
  %v240 = vpop.f32.mrb[0].mxu0
  %v241 = vadd.f32 0.0, %v240
  %242 = vmatprep.mubr.f32.mxu0 0.0
  %243 = vmatmul.mubr.f32.gmra.mrb[0].mxu0 %v102
  %v244 = vpop.f32.mrb[0].mxu0
  %v245 = vadd.f32 0.0, %v244
  %v246 = vpop.f32.mrb[0].mxu0
  %v247 = vadd.f32 0.0, %v246
  %248 = vmatprep.mubr.f32.mxu0 0.0
  %249 = vmatmul.mubr.f32.gmra.mrb[0].mxu0 %v103
  %v250 = vpop.f32.mrb[0].mxu0
  %v251 = vadd.f32 0.0, %v250
  %v252 = vpop.f32.mrb[0].mxu0
  %v253 = vadd.f32 0.0, %v252
  %254 = vmatprep.mubr.f32.mxu0 0.0
  %255 = vmatmul.mubr.f32.gmra.mrb[0].mxu0 %v104
  %v256 = vpop.f32.mrb[0].mxu0
  %v257 = vadd.f32 0.0, %v256
  %v258 = vpop.f32.mrb[0].mxu0
  %v259 = vadd.f32 0.0, %v258
  %260 = vmatprep.mubr.f32.mxu0 0.0
  %261 = vmatmul.mubr.f32.gmra.mrb[0].mxu0 %v105
  %v262 = vpop.f32.mrb[0].mxu0
  %v263 = vadd.f32 0.0, %v262
  %v264 = vpop.f32.mrb[0].mxu0
  %v265 = vadd.f32 0.0, %v264
  %266 = vmatprep.mubr.f32.mxu0 0.0
  %267 = vmatmul.mubr.f32.gmra.mrb[0].mxu0 %v106
  %v268 = vpop.f32.mrb[0].mxu0
  %v269 = vadd.f32 0.0, %v268
  %v270 = vpop.f32.mrb[0].mxu0
  %v271 = vadd.f32 0.0, %v270
  %272 = vmatprep.mubr.f32.mxu0 0.0
  %273 = vmatmul.mubr.f32.gmra.mrb[0].mxu0 %v107
  %v274 = vpop.f32.mrb[0].mxu0
  %v275 = vadd.f32 0.0, %v274
  %v276 = vpop.f32.mrb[0].mxu0
  %v277 = vadd.f32 0.0, %v276
  %278 = vmatprep.mubr.f32.mxu0 0.0
  %279 = vmatmul.mubr.f32.gmra.mrb[0].mxu0 %v108
  %v280 = vpop.f32.mrb[0].mxu0
  %v281 = vadd.f32 0.0, %v280
  %v282 = vpop.f32.mrb[0].mxu0
  %v283 = vadd.f32 0.0, %v282
  %284 = vmatprep.mubr.f32.mxu0 0.0
  %285 = vmatmul.mubr.f32.gmra.mrb[0].mxu0 %v109
  %v286 = vpop.f32.mrb[0].mxu0
  %v287 = vadd.f32 0.0, %v286
  %v288 = vpop.f32.mrb[0].mxu0
  %v289 = vadd.f32 0.0, %v288
  %290 = vmatprep.mubr.f32.mxu0 0.0
  %291 = vmatmul.mubr.f32.gmra.mrb[0].mxu0 %v110
  %v292 = vpop.f32.mrb[0].mxu0
  %v293 = vadd.f32 0.0, %v292
  %v294 = vpop.f32.mrb[0].mxu0
  %v295 = vadd.f32 0.0, %v294
  %296 = vmatprep.mubr.f32.mxu0 0.0
  %297 = vmatmul.mubr.f32.gmra.mrb[0].mxu0 %v111
  %v298 = vpop.f32.mrb[0].mxu0
  %v299 = vadd.f32 0.0, %v298
  %v300 = vpop.f32.mrb[0].mxu0
  %v301 = vadd.f32 0.0, %v300
  %302 = vmatprep.mubr.f32.mxu0 0.0
  %303 = vmatmul.mubr.f32.gmra.mrb[0].mxu0 %v112
  %v304 = vpop.f32.mrb[0].mxu0
  %v305 = vadd.f32 0.0, %v304
  %v306 = vpop.f32.mrb[0].mxu0
  %v307 = vadd.f32 0.0, %v306
  %308 = vmatprep.mubr.f32.mxu0 0.0
  %309 = vmatmul.mubr.f32.gmra.mrb[0].mxu0 %v113
  %v310 = vpop.f32.mrb[0].mxu0
  %v311 = vadd.f32 0.0, %v310
  %v312 = vpop.f32.mrb[0].mxu0
  %v313 = vadd.f32 0.0, %v312
  %314 = vmatprep.mubr.f32.mxu0 0.0
  %315 = vmatmul.mubr.f32.gmra.mrb[0].mxu0 %v114
  %v316 = vpop.f32.mrb[0].mxu0
  %v317 = vadd.f32 0.0, %v316
  %v318 = vpop.f32.mrb[0].mxu0
  %v319 = vadd.f32 0.0, %v318
  %320 = vmatprep.mubr.f32.mxu0 0.0
  %321 = vmatmul.mubr.f32.gmra.mrb[0].mxu0 %v115
  %v322 = vpop.f32.mrb[0].mxu0
  %v323 = vadd.f32 0.0, %v322
  %v324 = vpop.f32.mrb[0].mxu0
  %v325 = vadd.f32 0.0, %v324
  %326 = vmatprep.mubr.f32.mxu0 0.0
  %327 = vmatmul.mubr.f32.gmra.mrb[0].mxu0 %v116
  %v328 = vpop.f32.mrb[0].mxu0
  %v329 = vadd.f32 0.0, %v328
  %v330 = vpop.f32.mrb[0].mxu0
  %v331 = vadd.f32 0.0, %v330
  %332 = vmatprep.mubr.f32.mxu0 0.0
  %333 = vmatmul.mubr.f32.gmra.mrb[0].mxu0 %v117
  %v334 = vpop.f32.mrb[0].mxu0
  %v335 = vadd.f32 0.0, %v334
  %v336 = vpop.f32.mrb[0].mxu0
  %v337 = vadd.f32 0.0, %v336
  %338 = vmatprep.mubr.f32.mxu0 0.0
  %339 = vmatmul.mubr.f32.gmra.mrb[0].mxu0 %v118
  %v340 = vpop.f32.mrb[0].mxu0
  %v341 = vadd.f32 0.0, %v340
  %v342 = vpop.f32.mrb[0].mxu0
  %v343 = vadd.f32 0.0, %v342
  %344 = vmatprep.mubr.f32.mxu0 0.0
  %345 = vmatmul.mubr.f32.gmra.mrb[0].mxu0 %v119
  %v346 = vpop.f32.mrb[0].mxu0
  %v347 = vadd.f32 0.0, %v346
  %v348 = vpop.f32.mrb[0].mxu0
  %v349 = vadd.f32 0.0, %v348
  %350 = vmatprep.mubr.f32.mxu0 0.0
  %351 = vmatmul.mubr.f32.gmra.mrb[0].mxu0 %v120
  %v352 = vpop.f32.mrb[0].mxu0
  %v353 = vadd.f32 0.0, %v352
  %v354 = vpop.f32.mrb[0].mxu0
  %v355 = vadd.f32 0.0, %v354
  %356 = vmatprep.mubr.f32.mxu0 0.0
  %357 = vmatmul.mubr.f32.gmra.mrb[0].mxu0 %v121
  %v358 = vpop.f32.mrb[0].mxu0
  %v359 = vadd.f32 0.0, %v358
  %v360 = vpop.f32.mrb[0].mxu0
  %v361 = vadd.f32 0.0, %v360
  %362 = vmatprep.mubr.f32.mxu0 0.0
  %363 = vmatmul.mubr.f32.gmra.mrb[0].mxu0 %v122
  %v364 = vpop.f32.mrb[0].mxu0
  %v365 = vadd.f32 0.0, %v364
  %v366 = vpop.f32.mrb[0].mxu0
  %v367 = vadd.f32 0.0, %v366
  %368 = vmatprep.mubr.f32.mxu0 0.0
  %369 = vmatmul.mubr.f32.gmra.mrb[0].mxu0 %v123
  %v370 = vpop.f32.mrb[0].mxu0
  %v371 = vadd.f32 0.0, %v370
  %v372 = vpop.f32.mrb[0].mxu0
  %v373 = vadd.f32 0.0, %v372
  %374 = vmatprep.mubr.f32.mxu0 0.0
  %375 = vmatmul.mubr.f32.gmra.mrb[0].mxu0 %v124
  %v376 = vpop.f32.mrb[0].mxu0
  %v377 = vadd.f32 0.0, %v376
  %v378 = vpop.f32.mrb[0].mxu0
  %v379 = vadd.f32 0.0, %v378
  %380 = vmatprep.mubr.f32.mxu0 0.0
  %381 = vmatmul.mubr.f32.gmra.mrb[0].mxu0 %v125
  %v382 = vpop.f32.mrb[0].mxu0
  %v383 = vadd.f32 0.0, %v382
  %v384 = vpop.f32.mrb[0].mxu0
  %v385 = vadd.f32 0.0, %v384
  %386 = vmatprep.mubr.f32.mxu0 0.0
  %387 = vmatmul.mubr.f32.gmra.mrb[0].mxu0 %v126
  %v388 = vpop.f32.mrb[0].mxu0
  %v389 = vadd.f32 0.0, %v388
  %v390 = vpop.f32.mrb[0].mxu0
  %v391 = vadd.f32 0.0, %v390
  %392 = vmatprep.mubr.f32.mxu0 0.0
  %393 = vmatmul.mubr.f32.gmra.mrb[0].mxu0 %v127
  %v394 = vpop.f32.mrb[0].mxu0
  %v395 = vadd.f32 0.0, %v394
  %v396 = vpop.f32.mrb[0].mxu0
  %v397 = vadd.f32 0.0, %v396
  %398 = vmatprep.mubr.f32.mxu0 0.0
  %399 = vmatmul.mubr.f32.gmra.mrb[0].mxu0 %v128
  %v400 = vpop.f32.mrb[0].mxu0
  %v401 = vadd.f32 0.0, %v400
  %v402 = vpop.f32.mrb[0].mxu0
  %v403 = vadd.f32 0.0, %v402
  %404 = vmatprep.mubr.f32.mxu0 0.0
  %405 = vmatmul.mubr.f32.gmra.mrb[0].mxu0 %v129
  %v406 = vpop.f32.mrb[0].mxu0
  %v407 = vadd.f32 0.0, %v406
  %v408 = vpop.f32.mrb[0].mxu0
  %v409 = vadd.f32 0.0, %v408
  %410 = vdwg.mxu0
  %415 = vrot.lane.b32.xlu0 %v199, 75
  %v416 = vpop.permute.xlu0 %415
  %417 = vrot.lane.b32.xlu0 %v205, 75
  %v418 = vpop.permute.xlu0 %417
  %419 = vrot.lane.b32.xlu0 %v211, 75
  %v420 = vpop.permute.xlu0 %419
  %421 = vrot.lane.b32.xlu0 %v217, 75
  %v422 = vpop.permute.xlu0 %421
  %431 = vrot.lane.b32.xlu0 %v197, 15
  %v432 = vpop.permute.xlu0 %431
  %433 = vrot.lane.b32.xlu0 %v199, 15
  %v434 = vpop.permute.xlu0 %433
  %435 = vrot.lane.b32.xlu0 %v203, 15
  %v436 = vpop.permute.xlu0 %435
  %437 = vrot.lane.b32.xlu0 %v205, 15
  %v438 = vpop.permute.xlu0 %437
  %439 = vrot.lane.b32.xlu0 %v209, 15
  %v440 = vpop.permute.xlu0 %439
  %441 = vrot.lane.b32.xlu0 %v211, 15
  %v442 = vpop.permute.xlu0 %441
  %443 = vrot.lane.b32.xlu0 %v215, 15
  %v444 = vpop.permute.xlu0 %443
  %445 = vrot.lane.b32.xlu0 %v217, 15
  %v446 = vpop.permute.xlu0 %445
  %vm447 = vcmask 121856
  %v448 = vsel %vm447, %v432, %v434
  %v449 = vsel %vm447, %v436, %v438
  %v450 = vsel %vm447, %v440, %v442
  %v451 = vsel %vm447, %v444, %v446
  %v460 = vsel %vm447, %v416, %v432
  %v461 = vsel %vm447, %v418, %v436
  %v462 = vsel %vm447, %v420, %v440
  %v463 = vsel %vm447, %v422, %v444
  %v464 = vld [vmem:[%s2] sm:$0x3]
  %v466 = vlaneseq
  %v467 = vshrl.u32 %v466, 7
  %v468 = vsub.s32 0, %v467
  %v469 = vrot.slane %v464, %v468
  %v470 = vlaneseq
  %v471 = vshrl.u32 %v470, 7
  %v472 = vsub.s32 1, %v471
  %v473 = vrot.slane %v464, %v472
  %v476 = vmul.f32 %v460, %v469
  %v477 = vmul.f32 %v448, %v473
  %v478 = vmul.f32 %v461, %v469
  %v479 = vmul.f32 %v449, %v473
  %v480 = vmul.f32 %v462, %v469
  %v481 = vmul.f32 %v450, %v473
  %v482 = vmul.f32 %v463, %v469
  %v483 = vmul.f32 %v451, %v473
  %v484 = vadd.f32 %v293, %v476
  %v485 = vadd.f32 %v295, %v477
  %v486 = vadd.f32 %v299, %v478
  %v487 = vadd.f32 %v301, %v479
  %v488 = vadd.f32 %v305, %v480
  %v489 = vadd.f32 %v307, %v481
  %v490 = vadd.f32 %v311, %v482
  %v491 = vadd.f32 %v313, %v483
  %496 = vrot.lane.b32.xlu0 %v223, 74
  %v497 = vpop.permute.xlu0 %496
  %498 = vrot.lane.b32.xlu0 %v229, 74
  %v499 = vpop.permute.xlu0 %498
  %500 = vrot.lane.b32.xlu0 %v235, 74
  %v501 = vpop.permute.xlu0 %500
  %502 = vrot.lane.b32.xlu0 %v241, 74
  %v503 = vpop.permute.xlu0 %502
  %512 = vrot.lane.b32.xlu0 %v221, 14
  %v513 = vpop.permute.xlu0 %512
  %514 = vrot.lane.b32.xlu0 %v223, 14
  %v515 = vpop.permute.xlu0 %514
  %516 = vrot.lane.b32.xlu0 %v227, 14
  %v517 = vpop.permute.xlu0 %516
  %518 = vrot.lane.b32.xlu0 %v229, 14
  %v519 = vpop.permute.xlu0 %518
  %520 = vrot.lane.b32.xlu0 %v233, 14
  %v521 = vpop.permute.xlu0 %520
  %522 = vrot.lane.b32.xlu0 %v235, 14
  %v523 = vpop.permute.xlu0 %522
  %524 = vrot.lane.b32.xlu0 %v239, 14
  %v525 = vpop.permute.xlu0 %524
  %526 = vrot.lane.b32.xlu0 %v241, 14
  %v527 = vpop.permute.xlu0 %526
  %vm528 = vcmask 113664
  %v529 = vsel %vm528, %v513, %v515
  %v530 = vsel %vm528, %v517, %v519
  %v531 = vsel %vm528, %v521, %v523
  %v532 = vsel %vm528, %v525, %v527
  %v541 = vsel %vm528, %v497, %v513
  %v542 = vsel %vm528, %v499, %v517
  %v543 = vsel %vm528, %v501, %v521
  %v544 = vsel %vm528, %v503, %v525
  %s545 = scalar_lea.vmem %s2, 2
  %v546 = vld [vmem:[%s545] sm:$0x3]
  %v548 = vlaneseq
  %v549 = vshrl.u32 %v548, 7
  %v550 = vsub.s32 0, %v549
  %v551 = vrot.slane %v546, %v550
  %v552 = vlaneseq
  %v553 = vshrl.u32 %v552, 7
  %v554 = vsub.s32 1, %v553
  %v555 = vrot.slane %v546, %v554
  %v558 = vmul.f32 %v541, %v551
  %v559 = vmul.f32 %v529, %v555
  %v560 = vmul.f32 %v542, %v551
  %v561 = vmul.f32 %v530, %v555
  %v562 = vmul.f32 %v543, %v551
  %v563 = vmul.f32 %v531, %v555
  %v564 = vmul.f32 %v544, %v551
  %v565 = vmul.f32 %v532, %v555
  %v566 = vadd.f32 %v484, %v558
  %v567 = vadd.f32 %v485, %v559
  %v568 = vadd.f32 %v486, %v560
  %v569 = vadd.f32 %v487, %v561
  %v570 = vadd.f32 %v488, %v562
  %v571 = vadd.f32 %v489, %v563
  %v572 = vadd.f32 %v490, %v564
  %v573 = vadd.f32 %v491, %v565
  %578 = vrot.lane.b32.xlu0 %v247, 73
  %v579 = vpop.permute.xlu0 %578
  %580 = vrot.lane.b32.xlu0 %v253, 73
  %v581 = vpop.permute.xlu0 %580
  %582 = vrot.lane.b32.xlu0 %v259, 73
  %v583 = vpop.permute.xlu0 %582
  %584 = vrot.lane.b32.xlu0 %v265, 73
  %v585 = vpop.permute.xlu0 %584
  %594 = vrot.lane.b32.xlu0 %v245, 13
  %v595 = vpop.permute.xlu0 %594
  %596 = vrot.lane.b32.xlu0 %v247, 13
  %v597 = vpop.permute.xlu0 %596
  %598 = vrot.lane.b32.xlu0 %v251, 13
  %v599 = vpop.permute.xlu0 %598
  %600 = vrot.lane.b32.xlu0 %v253, 13
  %v601 = vpop.permute.xlu0 %600
  %602 = vrot.lane.b32.xlu0 %v257, 13
  %v603 = vpop.permute.xlu0 %602
  %604 = vrot.lane.b32.xlu0 %v259, 13
  %v605 = vpop.permute.xlu0 %604
  %606 = vrot.lane.b32.xlu0 %v263, 13
  %v607 = vpop.permute.xlu0 %606
  %608 = vrot.lane.b32.xlu0 %v265, 13
  %v609 = vpop.permute.xlu0 %608
  %vm610 = vcmask 105472
  %v611 = vsel %vm610, %v595, %v597
  %v612 = vsel %vm610, %v599, %v601
  %v613 = vsel %vm610, %v603, %v605
  %v614 = vsel %vm610, %v607, %v609
  %v623 = vsel %vm610, %v579, %v595
  %v624 = vsel %vm610, %v581, %v599
  %v625 = vsel %vm610, %v583, %v603
  %v626 = vsel %vm610, %v585, %v607
  %s627 = scalar_lea.vmem %s2, 4
  %v628 = vld [vmem:[%s627] sm:$0x3]
  %v630 = vlaneseq
  %v631 = vshrl.u32 %v630, 7
  %v632 = vsub.s32 0, %v631
  %v633 = vrot.slane %v628, %v632
  %v634 = vlaneseq
  %v635 = vshrl.u32 %v634, 7
  %v636 = vsub.s32 1, %v635
  %v637 = vrot.slane %v628, %v636
  %v640 = vmul.f32 %v623, %v633
  %v641 = vmul.f32 %v611, %v637
  %v642 = vmul.f32 %v624, %v633
  %v643 = vmul.f32 %v612, %v637
  %v644 = vmul.f32 %v625, %v633
  %v645 = vmul.f32 %v613, %v637
  %v646 = vmul.f32 %v626, %v633
  %v647 = vmul.f32 %v614, %v637
  %v648 = vadd.f32 %v566, %v640
  %v649 = vadd.f32 %v567, %v641
  %v650 = vadd.f32 %v568, %v642
  %v651 = vadd.f32 %v569, %v643
  %v652 = vadd.f32 %v570, %v644
  %v653 = vadd.f32 %v571, %v645
  %v654 = vadd.f32 %v572, %v646
  %v655 = vadd.f32 %v573, %v647
  %660 = vrot.lane.b32.xlu0 %v271, 61
  %v661 = vpop.permute.xlu0 %660
  %662 = vrot.lane.b32.xlu0 %v277, 61
  %v663 = vpop.permute.xlu0 %662
  %664 = vrot.lane.b32.xlu0 %v283, 61
  %v665 = vpop.permute.xlu0 %664
  %666 = vrot.lane.b32.xlu0 %v289, 61
  %v667 = vpop.permute.xlu0 %666
  %676 = vrot.lane.b32.xlu0 %v269, 1
  %v677 = vpop.permute.xlu0 %676
  %678 = vrot.lane.b32.xlu0 %v271, 1
  %v679 = vpop.permute.xlu0 %678
  %680 = vrot.lane.b32.xlu0 %v275, 1
  %v681 = vpop.permute.xlu0 %680
  %682 = vrot.lane.b32.xlu0 %v277, 1
  %v683 = vpop.permute.xlu0 %682
  %684 = vrot.lane.b32.xlu0 %v281, 1
  %v685 = vpop.permute.xlu0 %684
  %686 = vrot.lane.b32.xlu0 %v283, 1
  %v687 = vpop.permute.xlu0 %686
  %688 = vrot.lane.b32.xlu0 %v287, 1
  %v689 = vpop.permute.xlu0 %688
  %690 = vrot.lane.b32.xlu0 %v289, 1
  %v691 = vpop.permute.xlu0 %690
  %vm692 = vcmask 7168
  %v693 = vsel %vm692, %v677, %v679
  %v694 = vsel %vm692, %v681, %v683
  %v695 = vsel %vm692, %v685, %v687
  %v696 = vsel %vm692, %v689, %v691
  %v705 = vsel %vm692, %v661, %v677
  %v706 = vsel %vm692, %v663, %v681
  %v707 = vsel %vm692, %v665, %v685
  %v708 = vsel %vm692, %v667, %v689
  %s709 = scalar_lea.vmem %s2, 6
  %v710 = vld [vmem:[%s709] sm:$0x3]
  %v712 = vlaneseq
  %v713 = vshrl.u32 %v712, 7
  %v714 = vsub.s32 0, %v713
  %v715 = vrot.slane %v710, %v714
  %v716 = vlaneseq
  %v717 = vshrl.u32 %v716, 7
  %v718 = vsub.s32 1, %v717
  %v719 = vrot.slane %v710, %v718
  %v722 = vmul.f32 %v705, %v715
  %v723 = vmul.f32 %v693, %v719
  %v724 = vmul.f32 %v706, %v715
  %v725 = vmul.f32 %v694, %v719
  %v726 = vmul.f32 %v707, %v715
  %v727 = vmul.f32 %v695, %v719
  %v728 = vmul.f32 %v708, %v715
  %v729 = vmul.f32 %v696, %v719
  %v730 = vadd.f32 %v648, %v722
  %v731 = vadd.f32 %v649, %v723
  %v732 = vadd.f32 %v650, %v724
  %v733 = vadd.f32 %v651, %v725
  %v734 = vadd.f32 %v652, %v726
  %v735 = vadd.f32 %v653, %v727
  %v736 = vadd.f32 %v654, %v728
  %v737 = vadd.f32 %v655, %v729
  %746 = vrot.lane.b32.xlu0 %v317, 127
  %v747 = vpop.permute.xlu0 %746
  %748 = vrot.lane.b32.xlu0 %v319, 127
  %v749 = vpop.permute.xlu0 %748
  %750 = vrot.lane.b32.xlu0 %v323, 127
  %v751 = vpop.permute.xlu0 %750
  %752 = vrot.lane.b32.xlu0 %v325, 127
  %v753 = vpop.permute.xlu0 %752
  %754 = vrot.lane.b32.xlu0 %v329, 127
  %v755 = vpop.permute.xlu0 %754
  %756 = vrot.lane.b32.xlu0 %v331, 127
  %v757 = vpop.permute.xlu0 %756
  %758 = vrot.lane.b32.xlu0 %v335, 127
  %v759 = vpop.permute.xlu0 %758
  %760 = vrot.lane.b32.xlu0 %v337, 127
  %v761 = vpop.permute.xlu0 %760
  %vm762 = vcmask 1039360
  %v763 = vsel %vm762, %v747, %v749
  %v764 = vsel %vm762, %v751, %v753
  %v765 = vsel %vm762, %v755, %v757
  %v766 = vsel %vm762, %v759, %v761
  %775 = vrot.lane.b32.xlu0 %v317, 67
  %v776 = vpop.permute.xlu0 %775
  %777 = vrot.lane.b32.xlu0 %v323, 67
  %v778 = vpop.permute.xlu0 %777
  %779 = vrot.lane.b32.xlu0 %v329, 67
  %v780 = vpop.permute.xlu0 %779
  %781 = vrot.lane.b32.xlu0 %v335, 67
  %v782 = vpop.permute.xlu0 %781
  %vm787 = vcmask 547840
  %v788 = vsel %vm787, %v749, %v776
  %v789 = vsel %vm787, %v753, %v778
  %v790 = vsel %vm787, %v757, %v780
  %v791 = vsel %vm787, %v761, %v782
  %s792 = scalar_lea.vmem %s2, 10
  %v793 = vld [vmem:[%s792] sm:$0x3]
  %v795 = vlaneseq
  %v796 = vshrl.u32 %v795, 7
  %v797 = vsub.s32 0, %v796
  %v798 = vrot.slane %v793, %v797
  %v799 = vlaneseq
  %v800 = vshrl.u32 %v799, 7
  %v801 = vsub.s32 1, %v800
  %v802 = vrot.slane %v793, %v801
  %v805 = vmul.f32 %v763, %v798
  %v806 = vmul.f32 %v788, %v802
  %v807 = vmul.f32 %v764, %v798
  %v808 = vmul.f32 %v789, %v802
  %v809 = vmul.f32 %v765, %v798
  %v810 = vmul.f32 %v790, %v802
  %v811 = vmul.f32 %v766, %v798
  %v812 = vmul.f32 %v791, %v802
  %v813 = vadd.f32 %v730, %v805
  %v814 = vadd.f32 %v731, %v806
  %v815 = vadd.f32 %v732, %v807
  %v816 = vadd.f32 %v733, %v808
  %v817 = vadd.f32 %v734, %v809
  %v818 = vadd.f32 %v735, %v810
  %v819 = vadd.f32 %v736, %v811
  %v820 = vadd.f32 %v737, %v812
  %829 = vrot.lane.b32.xlu0 %v341, 115
  %v830 = vpop.permute.xlu0 %829
  %831 = vrot.lane.b32.xlu0 %v343, 115
  %v832 = vpop.permute.xlu0 %831
  %833 = vrot.lane.b32.xlu0 %v347, 115
  %v834 = vpop.permute.xlu0 %833
  %835 = vrot.lane.b32.xlu0 %v349, 115
  %v836 = vpop.permute.xlu0 %835
  %837 = vrot.lane.b32.xlu0 %v353, 115
  %v838 = vpop.permute.xlu0 %837
  %839 = vrot.lane.b32.xlu0 %v355, 115
  %v840 = vpop.permute.xlu0 %839
  %841 = vrot.lane.b32.xlu0 %v359, 115
  %v842 = vpop.permute.xlu0 %841
  %843 = vrot.lane.b32.xlu0 %v361, 115
  %v844 = vpop.permute.xlu0 %843
  %vm845 = vcmask 941056
  %v846 = vsel %vm845, %v830, %v832
  %v847 = vsel %vm845, %v834, %v836
  %v848 = vsel %vm845, %v838, %v840
  %v849 = vsel %vm845, %v842, %v844
  %858 = vrot.lane.b32.xlu0 %v341, 55
  %v859 = vpop.permute.xlu0 %858
  %860 = vrot.lane.b32.xlu0 %v347, 55
  %v861 = vpop.permute.xlu0 %860
  %862 = vrot.lane.b32.xlu0 %v353, 55
  %v863 = vpop.permute.xlu0 %862
  %864 = vrot.lane.b32.xlu0 %v359, 55
  %v865 = vpop.permute.xlu0 %864
  %vm870 = vcmask 449536
  %v871 = vsel %vm870, %v832, %v859
  %v872 = vsel %vm870, %v836, %v861
  %v873 = vsel %vm870, %v840, %v863
  %v874 = vsel %vm870, %v844, %v865
  %s875 = scalar_lea.vmem %s2, 12
  %v876 = vld [vmem:[%s875] sm:$0x3]
  %v878 = vlaneseq
  %v879 = vshrl.u32 %v878, 7
  %v880 = vsub.s32 0, %v879
  %v881 = vrot.slane %v876, %v880
  %v882 = vlaneseq
  %v883 = vshrl.u32 %v882, 7
  %v884 = vsub.s32 1, %v883
  %v885 = vrot.slane %v876, %v884
  %v888 = vmul.f32 %v846, %v881
  %v889 = vmul.f32 %v871, %v885
  %v890 = vmul.f32 %v847, %v881
  %v891 = vmul.f32 %v872, %v885
  %v892 = vmul.f32 %v848, %v881
  %v893 = vmul.f32 %v873, %v885
  %v894 = vmul.f32 %v849, %v881
  %v895 = vmul.f32 %v874, %v885
  %v896 = vadd.f32 %v813, %v888
  %v897 = vadd.f32 %v814, %v889
  %v898 = vadd.f32 %v815, %v890
  %v899 = vadd.f32 %v816, %v891
  %v900 = vadd.f32 %v817, %v892
  %v901 = vadd.f32 %v818, %v893
  %v902 = vadd.f32 %v819, %v894
  %v903 = vadd.f32 %v820, %v895
  %912 = vrot.lane.b32.xlu0 %v365, 114
  %v913 = vpop.permute.xlu0 %912
  %914 = vrot.lane.b32.xlu0 %v367, 114
  %v915 = vpop.permute.xlu0 %914
  %916 = vrot.lane.b32.xlu0 %v371, 114
  %v917 = vpop.permute.xlu0 %916
  %918 = vrot.lane.b32.xlu0 %v373, 114
  %v919 = vpop.permute.xlu0 %918
  %920 = vrot.lane.b32.xlu0 %v377, 114
  %v921 = vpop.permute.xlu0 %920
  %922 = vrot.lane.b32.xlu0 %v379, 114
  %v923 = vpop.permute.xlu0 %922
  %924 = vrot.lane.b32.xlu0 %v383, 114
  %v925 = vpop.permute.xlu0 %924
  %926 = vrot.lane.b32.xlu0 %v385, 114
  %v927 = vpop.permute.xlu0 %926
  %vm928 = vcmask 932864
  %v929 = vsel %vm928, %v913, %v915
  %v930 = vsel %vm928, %v917, %v919
  %v931 = vsel %vm928, %v921, %v923
  %v932 = vsel %vm928, %v925, %v927
  %941 = vrot.lane.b32.xlu0 %v365, 54
  %v942 = vpop.permute.xlu0 %941
  %943 = vrot.lane.b32.xlu0 %v371, 54
  %v944 = vpop.permute.xlu0 %943
  %945 = vrot.lane.b32.xlu0 %v377, 54
  %v946 = vpop.permute.xlu0 %945
  %947 = vrot.lane.b32.xlu0 %v383, 54
  %v948 = vpop.permute.xlu0 %947
  %vm953 = vcmask 441344
  %v954 = vsel %vm953, %v915, %v942
  %v955 = vsel %vm953, %v919, %v944
  %v956 = vsel %vm953, %v923, %v946
  %v957 = vsel %vm953, %v927, %v948
  %s958 = scalar_lea.vmem %s2, 14
  %v959 = vld [vmem:[%s958] sm:$0x3]
  %v961 = vlaneseq
  %v962 = vshrl.u32 %v961, 7
  %v963 = vsub.s32 0, %v962
  %v964 = vrot.slane %v959, %v963
  %v965 = vlaneseq
  %v966 = vshrl.u32 %v965, 7
  %v967 = vsub.s32 1, %v966
  %v968 = vrot.slane %v959, %v967
  %v971 = vmul.f32 %v929, %v964
  %v972 = vmul.f32 %v954, %v968
  %v973 = vmul.f32 %v930, %v964
  %v974 = vmul.f32 %v955, %v968
  %v975 = vmul.f32 %v931, %v964
  %v976 = vmul.f32 %v956, %v968
  %v977 = vmul.f32 %v932, %v964
  %v978 = vmul.f32 %v957, %v968
  %v979 = vadd.f32 %v896, %v971
  %v980 = vadd.f32 %v897, %v972
  %v981 = vadd.f32 %v898, %v973
  %v982 = vadd.f32 %v899, %v974
  %v983 = vadd.f32 %v900, %v975
  %v984 = vadd.f32 %v901, %v976
  %v985 = vadd.f32 %v902, %v977
  %v986 = vadd.f32 %v903, %v978
  %995 = vrot.lane.b32.xlu0 %v389, 113
  %v996 = vpop.permute.xlu0 %995
  %997 = vrot.lane.b32.xlu0 %v391, 113
  %v998 = vpop.permute.xlu0 %997
  %999 = vrot.lane.b32.xlu0 %v395, 113
  %v1000 = vpop.permute.xlu0 %999
  %1001 = vrot.lane.b32.xlu0 %v397, 113
  %v1002 = vpop.permute.xlu0 %1001
  %1003 = vrot.lane.b32.xlu0 %v401, 113
  %v1004 = vpop.permute.xlu0 %1003
  %1005 = vrot.lane.b32.xlu0 %v403, 113
  %v1006 = vpop.permute.xlu0 %1005
  %1007 = vrot.lane.b32.xlu0 %v407, 113
  %v1008 = vpop.permute.xlu0 %1007
  %1009 = vrot.lane.b32.xlu0 %v409, 113
  %v1010 = vpop.permute.xlu0 %1009
  %vm1011 = vcmask 924672
  %v1012 = vsel %vm1011, %v996, %v998
  %v1013 = vsel %vm1011, %v1000, %v1002
  %v1014 = vsel %vm1011, %v1004, %v1006
  %v1015 = vsel %vm1011, %v1008, %v1010
  %1024 = vrot.lane.b32.xlu0 %v389, 53
  %v1025 = vpop.permute.xlu0 %1024
  %1026 = vrot.lane.b32.xlu0 %v395, 53
  %v1027 = vpop.permute.xlu0 %1026
  %1028 = vrot.lane.b32.xlu0 %v401, 53
  %v1029 = vpop.permute.xlu0 %1028
  %1030 = vrot.lane.b32.xlu0 %v407, 53
  %v1031 = vpop.permute.xlu0 %1030
  %vm1036 = vcmask 433152
  %v1037 = vsel %vm1036, %v998, %v1025
  %v1038 = vsel %vm1036, %v1002, %v1027
  %v1039 = vsel %vm1036, %v1006, %v1029
  %v1040 = vsel %vm1036, %v1010, %v1031
  %s1041 = scalar_lea.vmem %s2, 16
  %v1042 = vld [vmem:[%s1041] sm:$0x3]
  %v1044 = vlaneseq
  %v1045 = vshrl.u32 %v1044, 7
  %v1046 = vsub.s32 0, %v1045
  %v1047 = vrot.slane %v1042, %v1046
  %v1048 = vlaneseq
  %v1049 = vshrl.u32 %v1048, 7
  %v1050 = vsub.s32 1, %v1049
  %v1051 = vrot.slane %v1042, %v1050
  %v1054 = vmul.f32 %v1012, %v1047
  %v1055 = vmul.f32 %v1037, %v1051
  %v1056 = vmul.f32 %v1013, %v1047
  %v1057 = vmul.f32 %v1038, %v1051
  %v1058 = vmul.f32 %v1014, %v1047
  %v1059 = vmul.f32 %v1039, %v1051
  %v1060 = vmul.f32 %v1015, %v1047
  %v1061 = vmul.f32 %v1040, %v1051
  %v1062 = vadd.f32 %v979, %v1054
  %v1063 = vadd.f32 %v980, %v1055
  %v1064 = vadd.f32 %v981, %v1056
  %v1065 = vadd.f32 %v982, %v1057
  %v1066 = vadd.f32 %v983, %v1058
  %v1067 = vadd.f32 %v984, %v1059
  %v1068 = vadd.f32 %v985, %v1060
  %v1069 = vadd.f32 %v986, %v1061
  %v1070 = vld [vmem:[%s3] sm:$0xff]
  %v1071 = vld [vmem:[%s3 + $0x8] sm:$0xff]
  %v1072 = vld [vmem:[%s3 + $0x10] sm:$0xff]
  %v1073 = vld [vmem:[%s3 + $0x18] sm:$0xff]
  %v1074 = vld [vmem:[%s3 + $0x20] sm:$0xff]
  %v1075 = vld [vmem:[%s3 + $0x28] sm:$0xff]
  %v1076 = vld [vmem:[%s3 + $0x30] sm:$0xff]
  %v1077 = vld [vmem:[%s3 + $0x38] sm:$0xff]
  %v1078 = vld [vmem:[%s3 + $0x40] sm:$0xff]
  %v1079 = vld [vmem:[%s3 + $0x48] sm:$0xff]
  %v1080 = vld [vmem:[%s3 + $0x50] sm:$0xff]
  %v1081 = vld [vmem:[%s3 + $0x58] sm:$0xff]
  %v1082 = vld [vmem:[%s3 + $0x60] sm:$0xff]
  %v1083 = vld [vmem:[%s3 + $0x68] sm:$0xff]
  %v1084 = vld [vmem:[%s3 + $0x70] sm:$0xff]
  %v1085 = vld [vmem:[%s3 + $0x78] sm:$0xff]
  %v1086 = vld [vmem:[%s3 + $0x80] sm:$0xff]
  %v1087 = vld [vmem:[%s3 + $0x88] sm:$0xff]
  %v1088 = vld [vmem:[%s3 + $0x90] sm:$0xff]
  %v1089 = vld [vmem:[%s3 + $0x98] sm:$0xff]
  %v1090 = vld [vmem:[%s3 + $0xa0] sm:$0xff]
  %v1091 = vld [vmem:[%s3 + $0xa8] sm:$0xff]
  %v1092 = vld [vmem:[%s3 + $0xb0] sm:$0xff]
  %v1093 = vld [vmem:[%s3 + $0xb8] sm:$0xff]
  %v1094 = vld [vmem:[%s3 + $0xc0] sm:$0xff]
  %v1095 = vld [vmem:[%s3 + $0xc8] sm:$0xff]
  %v1096 = vld [vmem:[%s3 + $0xd0] sm:$0xff]
  %v1097 = vld [vmem:[%s3 + $0xd8] sm:$0xff]
  %v1098 = vld [vmem:[%s3 + $0xe0] sm:$0xff]
  %v1099 = vld [vmem:[%s3 + $0xe8] sm:$0xff]
  %v1100 = vld [vmem:[%s3 + $0xf0] sm:$0xff]
  %v1101 = vld [vmem:[%s3 + $0xf8] sm:$0xff]
  %v1102 = vld [vmem:[%s3 + $0x100] sm:$0xff]
  %v1103 = vld [vmem:[%s3 + $0x108] sm:$0xff]
  %v1104 = vld [vmem:[%s3 + $0x110] sm:$0xff]
  %v1105 = vld [vmem:[%s3 + $0x118] sm:$0xff]
  %v1106 = vld [vmem:[%s3 + $0x120] sm:$0xff]
  %v1107 = vld [vmem:[%s3 + $0x128] sm:$0xff]
  %v1108 = vld [vmem:[%s3 + $0x130] sm:$0xff]
  %v1109 = vld [vmem:[%s3 + $0x138] sm:$0xff]
  %v1110 = vld [vmem:[%s3 + $0x140] sm:$0xff]
  %v1111 = vld [vmem:[%s3 + $0x148] sm:$0xff]
  %v1112 = vld [vmem:[%s3 + $0x150] sm:$0xff]
  %v1113 = vld [vmem:[%s3 + $0x158] sm:$0xff]
  %v1114 = vld [vmem:[%s3 + $0x160] sm:$0xff]
  %v1115 = vld [vmem:[%s3 + $0x168] sm:$0xff]
  %v1116 = vld [vmem:[%s3 + $0x170] sm:$0xff]
  %v1117 = vld [vmem:[%s3 + $0x178] sm:$0xff]
  %v1118 = vld [vmem:[%s3 + $0x180] sm:$0xff]
  %v1119 = vld [vmem:[%s3 + $0x188] sm:$0xff]
  %v1120 = vld [vmem:[%s3 + $0x190] sm:$0xff]
  %v1121 = vld [vmem:[%s3 + $0x198] sm:$0xff]
  %v1122 = vld [vmem:[%s3 + $0x1a0] sm:$0xff]
  %v1123 = vld [vmem:[%s3 + $0x1a8] sm:$0xff]
  %v1124 = vld [vmem:[%s3 + $0x1b0] sm:$0xff]
  %v1125 = vld [vmem:[%s3 + $0x1b8] sm:$0xff]
  %v1126 = vld [vmem:[%s3 + $0x1c0] sm:$0xff]
  %v1127 = vld [vmem:[%s3 + $0x1c8] sm:$0xff]
  %v1128 = vld [vmem:[%s3 + $0x1d0] sm:$0xff]
  %v1129 = vld [vmem:[%s3 + $0x1d8] sm:$0xff]
  %v1130 = vld [vmem:[%s3 + $0x1e0] sm:$0xff]
  %v1131 = vld [vmem:[%s3 + $0x1e8] sm:$0xff]
  %v1132 = vld [vmem:[%s3 + $0x1f0] sm:$0xff]
  %v1133 = vld [vmem:[%s3 + $0x1f8] sm:$0xff]
  %1134 = vst [vmem:[%s19] sm:$0xff] %v1070
  %vm1135 = vcmask 556032
  %1136 = vst.msk [vmem:[%s19 + $0x8] sm:$0xff] %vm1135, %v1071
  %1137 = vst [vmem:[%s19 + $0x10] sm:$0xff] %v1072
  %1138 = vst.msk [vmem:[%s19 + $0x18] sm:$0xff] %vm1135, %v1073
  %1139 = vst [vmem:[%s19 + $0x20] sm:$0xff] %v1074
  %1140 = vst.msk [vmem:[%s19 + $0x28] sm:$0xff] %vm1135, %v1075
  %1141 = vst [vmem:[%s19 + $0x30] sm:$0xff] %v1076
  %1142 = vst.msk [vmem:[%s19 + $0x38] sm:$0xff] %vm1135, %v1077
  %1143 = vst [vmem:[%s19 + $0x40] sm:$0xff] %v1078
  %1144 = vst.msk [vmem:[%s19 + $0x48] sm:$0xff] %vm1135, %v1079
  %1145 = vst [vmem:[%s19 + $0x50] sm:$0xff] %v1080
  %1146 = vst.msk [vmem:[%s19 + $0x58] sm:$0xff] %vm1135, %v1081
  %1147 = vst [vmem:[%s19 + $0x60] sm:$0xff] %v1082
  %1148 = vst.msk [vmem:[%s19 + $0x68] sm:$0xff] %vm1135, %v1083
  %1149 = vst [vmem:[%s19 + $0x70] sm:$0xff] %v1084
  %1150 = vst.msk [vmem:[%s19 + $0x78] sm:$0xff] %vm1135, %v1085
  %1151 = vst [vmem:[%s19 + $0x80] sm:$0xff] %v1086
  %1152 = vst.msk [vmem:[%s19 + $0x88] sm:$0xff] %vm1135, %v1087
  %1153 = vst [vmem:[%s19 + $0x90] sm:$0xff] %v1088
  %1154 = vst.msk [vmem:[%s19 + $0x98] sm:$0xff] %vm1135, %v1089
  %1155 = vst [vmem:[%s19 + $0xa0] sm:$0xff] %v1090
  %1156 = vst.msk [vmem:[%s19 + $0xa8] sm:$0xff] %vm1135, %v1091
  %1157 = vst [vmem:[%s19 + $0xb0] sm:$0xff] %v1092
  %1158 = vst.msk [vmem:[%s19 + $0xb8] sm:$0xff] %vm1135, %v1093
  %1159 = vst [vmem:[%s19 + $0xc0] sm:$0xff] %v1094
  %1160 = vst.msk [vmem:[%s19 + $0xc8] sm:$0xff] %vm1135, %v1095
  %1161 = vst [vmem:[%s19 + $0xd0] sm:$0xff] %v1096
  %1162 = vst.msk [vmem:[%s19 + $0xd8] sm:$0xff] %vm1135, %v1097
  %1163 = vst [vmem:[%s19 + $0xe0] sm:$0xff] %v1098
  %1164 = vst.msk [vmem:[%s19 + $0xe8] sm:$0xff] %vm1135, %v1099
  %1165 = vst [vmem:[%s19 + $0xf0] sm:$0xff] %v1100
  %1166 = vst.msk [vmem:[%s19 + $0xf8] sm:$0xff] %vm1135, %v1101
  %1167 = vst [vmem:[%s19 + $0x100] sm:$0xff] %v1102
  %1168 = vst.msk [vmem:[%s19 + $0x108] sm:$0xff] %vm1135, %v1103
  %1169 = vst [vmem:[%s19 + $0x110] sm:$0xff] %v1104
  %1170 = vst.msk [vmem:[%s19 + $0x118] sm:$0xff] %vm1135, %v1105
  %1171 = vst [vmem:[%s19 + $0x120] sm:$0xff] %v1106
  %1172 = vst.msk [vmem:[%s19 + $0x128] sm:$0xff] %vm1135, %v1107
  %1173 = vst [vmem:[%s19 + $0x130] sm:$0xff] %v1108
  %1174 = vst.msk [vmem:[%s19 + $0x138] sm:$0xff] %vm1135, %v1109
  %1175 = vst [vmem:[%s19 + $0x140] sm:$0xff] %v1110
  %1176 = vst.msk [vmem:[%s19 + $0x148] sm:$0xff] %vm1135, %v1111
  %1177 = vst [vmem:[%s19 + $0x150] sm:$0xff] %v1112
  %1178 = vst.msk [vmem:[%s19 + $0x158] sm:$0xff] %vm1135, %v1113
  %1179 = vst [vmem:[%s19 + $0x160] sm:$0xff] %v1114
  %1180 = vst.msk [vmem:[%s19 + $0x168] sm:$0xff] %vm1135, %v1115
  %1181 = vst [vmem:[%s19 + $0x170] sm:$0xff] %v1116
  %1182 = vst.msk [vmem:[%s19 + $0x178] sm:$0xff] %vm1135, %v1117
  %1183 = vst [vmem:[%s19 + $0x180] sm:$0xff] %v1118
  %1184 = vst.msk [vmem:[%s19 + $0x188] sm:$0xff] %vm1135, %v1119
  %1185 = vst [vmem:[%s19 + $0x190] sm:$0xff] %v1120
  %1186 = vst.msk [vmem:[%s19 + $0x198] sm:$0xff] %vm1135, %v1121
  %1187 = vst [vmem:[%s19 + $0x1a0] sm:$0xff] %v1122
  %1188 = vst.msk [vmem:[%s19 + $0x1a8] sm:$0xff] %vm1135, %v1123
  %1189 = vst [vmem:[%s19 + $0x1b0] sm:$0xff] %v1124
  %1190 = vst.msk [vmem:[%s19 + $0x1b8] sm:$0xff] %vm1135, %v1125
  %1191 = vst [vmem:[%s19 + $0x1c0] sm:$0xff] %v1126
  %1192 = vst.msk [vmem:[%s19 + $0x1c8] sm:$0xff] %vm1135, %v1127
  %1193 = vst [vmem:[%s19 + $0x1d0] sm:$0xff] %v1128
  %1194 = vst.msk [vmem:[%s19 + $0x1d8] sm:$0xff] %vm1135, %v1129
  %1195 = vst [vmem:[%s19 + $0x1e0] sm:$0xff] %v1130
  %1196 = vst.msk [vmem:[%s19 + $0x1e8] sm:$0xff] %vm1135, %v1131
  %1197 = vst [vmem:[%s19 + $0x1f0] sm:$0xff] %v1132
  %1198 = vst.msk [vmem:[%s19 + $0x1f8] sm:$0xff] %vm1135, %v1133
  %v1199 = vld [vmem:[%s4] sm:$0xff]
  %v1200 = vld [vmem:[%s4 + $0x8] sm:$0xff]
  %v1201 = vld [vmem:[%s4 + $0x10] sm:$0xff]
  %v1202 = vld [vmem:[%s4 + $0x18] sm:$0xff]
  %v1203 = vld [vmem:[%s4 + $0x20] sm:$0xff]
  %v1204 = vld [vmem:[%s4 + $0x28] sm:$0xff]
  %v1205 = vld [vmem:[%s4 + $0x30] sm:$0xff]
  %v1206 = vld [vmem:[%s4 + $0x38] sm:$0xff]
  %1207 = vst [vmem:[%s19 + $0x200] sm:$0xff] %v1199
  %1208 = vst.msk [vmem:[%s19 + $0x208] sm:$0xff] %vm1135, %v1200
  %1209 = vst [vmem:[%s19 + $0x210] sm:$0xff] %v1201
  %1210 = vst.msk [vmem:[%s19 + $0x218] sm:$0xff] %vm1135, %v1202
  %1211 = vst [vmem:[%s19 + $0x220] sm:$0xff] %v1203
  %1212 = vst.msk [vmem:[%s19 + $0x228] sm:$0xff] %vm1135, %v1204
  %1213 = vst [vmem:[%s19 + $0x230] sm:$0xff] %v1205
  %1214 = vst.msk [vmem:[%s19 + $0x238] sm:$0xff] %vm1135, %v1206
  %v1215 = vld [vmem:[%s5] sm:$0xff]
  %v1216 = vld [vmem:[%s5 + $0x8] sm:$0xff]
  %v1217 = vld [vmem:[%s5 + $0x10] sm:$0xff]
  %v1218 = vld [vmem:[%s5 + $0x18] sm:$0xff]
  %v1219 = vld [vmem:[%s5 + $0x20] sm:$0xff]
  %v1220 = vld [vmem:[%s5 + $0x28] sm:$0xff]
  %v1221 = vld [vmem:[%s5 + $0x30] sm:$0xff]
  %v1222 = vld [vmem:[%s5 + $0x38] sm:$0xff]
  %1223 = vst [vmem:[%s19 + $0x240] sm:$0xff] %v1215
  %1224 = vst.msk [vmem:[%s19 + $0x248] sm:$0xff] %vm1135, %v1216
  %1225 = vst [vmem:[%s19 + $0x250] sm:$0xff] %v1217
  %1226 = vst.msk [vmem:[%s19 + $0x258] sm:$0xff] %vm1135, %v1218
  %1227 = vst [vmem:[%s19 + $0x260] sm:$0xff] %v1219
  %1228 = vst.msk [vmem:[%s19 + $0x268] sm:$0xff] %vm1135, %v1220
  %1229 = vst [vmem:[%s19 + $0x270] sm:$0xff] %v1221
  %1230 = vst.msk [vmem:[%s19 + $0x278] sm:$0xff] %vm1135, %v1222
  %v1231 = vld [vmem:[%s6] sm:$0xff]
  %v1232 = vld [vmem:[%s6 + $0x8] sm:$0xff]
  %v1233 = vld [vmem:[%s6 + $0x10] sm:$0xff]
  %v1234 = vld [vmem:[%s6 + $0x18] sm:$0xff]
  %v1235 = vld [vmem:[%s6 + $0x20] sm:$0xff]
  %v1236 = vld [vmem:[%s6 + $0x28] sm:$0xff]
  %v1237 = vld [vmem:[%s6 + $0x30] sm:$0xff]
  %v1238 = vld [vmem:[%s6 + $0x38] sm:$0xff]
  %1239 = vst [vmem:[%s19 + $0x280] sm:$0xff] %v1231
  %1240 = vst.msk [vmem:[%s19 + $0x288] sm:$0xff] %vm1135, %v1232
  %1241 = vst [vmem:[%s19 + $0x290] sm:$0xff] %v1233
  %1242 = vst.msk [vmem:[%s19 + $0x298] sm:$0xff] %vm1135, %v1234
  %1243 = vst [vmem:[%s19 + $0x2a0] sm:$0xff] %v1235
  %1244 = vst.msk [vmem:[%s19 + $0x2a8] sm:$0xff] %vm1135, %v1236
  %1245 = vst [vmem:[%s19 + $0x2b0] sm:$0xff] %v1237
  %1246 = vst.msk [vmem:[%s19 + $0x2b8] sm:$0xff] %vm1135, %v1238
  %v1247 = vld [vmem:[%s7] sm:$0xff]
  %v1248 = vld [vmem:[%s7 + $0x8] sm:$0xff]
  %v1249 = vld [vmem:[%s7 + $0x10] sm:$0xff]
  %v1250 = vld [vmem:[%s7 + $0x18] sm:$0xff]
  %v1251 = vld [vmem:[%s7 + $0x20] sm:$0xff]
  %v1252 = vld [vmem:[%s7 + $0x28] sm:$0xff]
  %v1253 = vld [vmem:[%s7 + $0x30] sm:$0xff]
  %v1254 = vld [vmem:[%s7 + $0x38] sm:$0xff]
  %1255 = vst [vmem:[%s19 + $0x2c0] sm:$0xff] %v1247
  %1256 = vst.msk [vmem:[%s19 + $0x2c8] sm:$0xff] %vm1135, %v1248
  %1257 = vst [vmem:[%s19 + $0x2d0] sm:$0xff] %v1249
  %1258 = vst.msk [vmem:[%s19 + $0x2d8] sm:$0xff] %vm1135, %v1250
  %1259 = vst [vmem:[%s19 + $0x2e0] sm:$0xff] %v1251
  %1260 = vst.msk [vmem:[%s19 + $0x2e8] sm:$0xff] %vm1135, %v1252
  %1261 = vst [vmem:[%s19 + $0x2f0] sm:$0xff] %v1253
  %1262 = vst.msk [vmem:[%s19 + $0x2f8] sm:$0xff] %vm1135, %v1254
  %v1263 = vld [vmem:[%s8] sm:$0xff]
  %v1264 = vld [vmem:[%s8 + $0x8] sm:$0xff]
  %v1265 = vld [vmem:[%s8 + $0x10] sm:$0xff]
  %v1266 = vld [vmem:[%s8 + $0x18] sm:$0xff]
  %v1267 = vld [vmem:[%s8 + $0x20] sm:$0xff]
  %v1268 = vld [vmem:[%s8 + $0x28] sm:$0xff]
  %v1269 = vld [vmem:[%s8 + $0x30] sm:$0xff]
  %v1270 = vld [vmem:[%s8 + $0x38] sm:$0xff]
  %1271 = vst [vmem:[%s19 + $0x300] sm:$0xff] %v1263
  %1272 = vst.msk [vmem:[%s19 + $0x308] sm:$0xff] %vm1135, %v1264
  %1273 = vst [vmem:[%s19 + $0x310] sm:$0xff] %v1265
  %1274 = vst.msk [vmem:[%s19 + $0x318] sm:$0xff] %vm1135, %v1266
  %1275 = vst [vmem:[%s19 + $0x320] sm:$0xff] %v1267
  %1276 = vst.msk [vmem:[%s19 + $0x328] sm:$0xff] %vm1135, %v1268
  %1277 = vst [vmem:[%s19 + $0x330] sm:$0xff] %v1269
  %1278 = vst.msk [vmem:[%s19 + $0x338] sm:$0xff] %vm1135, %v1270
  %v1279 = vld [vmem:[%s9] sm:$0xff]
  %v1280 = vld [vmem:[%s9 + $0x8] sm:$0xff]
  %v1281 = vld [vmem:[%s9 + $0x10] sm:$0xff]
  %v1282 = vld [vmem:[%s9 + $0x18] sm:$0xff]
  %v1283 = vld [vmem:[%s9 + $0x20] sm:$0xff]
  %v1284 = vld [vmem:[%s9 + $0x28] sm:$0xff]
  %v1285 = vld [vmem:[%s9 + $0x30] sm:$0xff]
  %v1286 = vld [vmem:[%s9 + $0x38] sm:$0xff]
  %1287 = vst [vmem:[%s19 + $0x340] sm:$0xff] %v1279
  %1288 = vst.msk [vmem:[%s19 + $0x348] sm:$0xff] %vm1135, %v1280
  %1289 = vst [vmem:[%s19 + $0x350] sm:$0xff] %v1281
  %1290 = vst.msk [vmem:[%s19 + $0x358] sm:$0xff] %vm1135, %v1282
  %1291 = vst [vmem:[%s19 + $0x360] sm:$0xff] %v1283
  %1292 = vst.msk [vmem:[%s19 + $0x368] sm:$0xff] %vm1135, %v1284
  %1293 = vst [vmem:[%s19 + $0x370] sm:$0xff] %v1285
  %1294 = vst.msk [vmem:[%s19 + $0x378] sm:$0xff] %vm1135, %v1286
  %v1295 = vld [vmem:[%s10] sm:$0xff]
  %v1296 = vld [vmem:[%s10 + $0x8] sm:$0xff]
  %v1297 = vld [vmem:[%s10 + $0x10] sm:$0xff]
  %v1298 = vld [vmem:[%s10 + $0x18] sm:$0xff]
  %v1299 = vld [vmem:[%s10 + $0x20] sm:$0xff]
  %v1300 = vld [vmem:[%s10 + $0x28] sm:$0xff]
  %v1301 = vld [vmem:[%s10 + $0x30] sm:$0xff]
  %v1302 = vld [vmem:[%s10 + $0x38] sm:$0xff]
  %1303 = vst [vmem:[%s19 + $0x380] sm:$0xff] %v1295
  %1304 = vst.msk [vmem:[%s19 + $0x388] sm:$0xff] %vm1135, %v1296
  %1305 = vst [vmem:[%s19 + $0x390] sm:$0xff] %v1297
  %1306 = vst.msk [vmem:[%s19 + $0x398] sm:$0xff] %vm1135, %v1298
  %1307 = vst [vmem:[%s19 + $0x3a0] sm:$0xff] %v1299
  %1308 = vst.msk [vmem:[%s19 + $0x3a8] sm:$0xff] %vm1135, %v1300
  %1309 = vst [vmem:[%s19 + $0x3b0] sm:$0xff] %v1301
  %1310 = vst.msk [vmem:[%s19 + $0x3b8] sm:$0xff] %vm1135, %v1302
  %v1311 = vld [vmem:[%s11] sm:$0xff]
  %v1312 = vld [vmem:[%s11 + $0x8] sm:$0xff]
  %v1313 = vld [vmem:[%s11 + $0x10] sm:$0xff]
  %v1314 = vld [vmem:[%s11 + $0x18] sm:$0xff]
  %v1315 = vld [vmem:[%s11 + $0x20] sm:$0xff]
  %v1316 = vld [vmem:[%s11 + $0x28] sm:$0xff]
  %v1317 = vld [vmem:[%s11 + $0x30] sm:$0xff]
  %v1318 = vld [vmem:[%s11 + $0x38] sm:$0xff]
  %1319 = vst [vmem:[%s19 + $0x3c0] sm:$0xff] %v1311
  %1320 = vst.msk [vmem:[%s19 + $0x3c8] sm:$0xff] %vm1135, %v1312
  %1321 = vst [vmem:[%s19 + $0x3d0] sm:$0xff] %v1313
  %1322 = vst.msk [vmem:[%s19 + $0x3d8] sm:$0xff] %vm1135, %v1314
  %1323 = vst [vmem:[%s19 + $0x3e0] sm:$0xff] %v1315
  %1324 = vst.msk [vmem:[%s19 + $0x3e8] sm:$0xff] %vm1135, %v1316
  %1325 = vst [vmem:[%s19 + $0x3f0] sm:$0xff] %v1317
  %1326 = vst.msk [vmem:[%s19 + $0x3f8] sm:$0xff] %vm1135, %v1318
  %v1327 = vld [vmem:[%s12] sm:$0xff]
  %v1328 = vld [vmem:[%s12 + $0x8] sm:$0xff]
  %v1329 = vld [vmem:[%s12 + $0x10] sm:$0xff]
  %v1330 = vld [vmem:[%s12 + $0x18] sm:$0xff]
  %v1331 = vld [vmem:[%s12 + $0x20] sm:$0xff]
  %v1332 = vld [vmem:[%s12 + $0x28] sm:$0xff]
  %v1333 = vld [vmem:[%s12 + $0x30] sm:$0xff]
  %v1334 = vld [vmem:[%s12 + $0x38] sm:$0xff]
  %1335 = vst [vmem:[%s19 + $0x400] sm:$0xff] %v1327
  %1336 = vst.msk [vmem:[%s19 + $0x408] sm:$0xff] %vm1135, %v1328
  %1337 = vst [vmem:[%s19 + $0x410] sm:$0xff] %v1329
  %1338 = vst.msk [vmem:[%s19 + $0x418] sm:$0xff] %vm1135, %v1330
  %1339 = vst [vmem:[%s19 + $0x420] sm:$0xff] %v1331
  %1340 = vst.msk [vmem:[%s19 + $0x428] sm:$0xff] %vm1135, %v1332
  %1341 = vst [vmem:[%s19 + $0x430] sm:$0xff] %v1333
  %1342 = vst.msk [vmem:[%s19 + $0x438] sm:$0xff] %vm1135, %v1334
  %v1343 = vld [vmem:[%s13] sm:$0xff]
  %v1344 = vld [vmem:[%s13 + $0x8] sm:$0xff]
  %v1345 = vld [vmem:[%s13 + $0x10] sm:$0xff]
  %v1346 = vld [vmem:[%s13 + $0x18] sm:$0xff]
  %v1347 = vld [vmem:[%s13 + $0x20] sm:$0xff]
  %v1348 = vld [vmem:[%s13 + $0x28] sm:$0xff]
  %v1349 = vld [vmem:[%s13 + $0x30] sm:$0xff]
  %v1350 = vld [vmem:[%s13 + $0x38] sm:$0xff]
  %1351 = vst [vmem:[%s19 + $0x440] sm:$0xff] %v1343
  %1352 = vst.msk [vmem:[%s19 + $0x448] sm:$0xff] %vm1135, %v1344
  %1353 = vst [vmem:[%s19 + $0x450] sm:$0xff] %v1345
  %1354 = vst.msk [vmem:[%s19 + $0x458] sm:$0xff] %vm1135, %v1346
  %1355 = vst [vmem:[%s19 + $0x460] sm:$0xff] %v1347
  %1356 = vst.msk [vmem:[%s19 + $0x468] sm:$0xff] %vm1135, %v1348
  %1357 = vst [vmem:[%s19 + $0x470] sm:$0xff] %v1349
  %1358 = vst.msk [vmem:[%s19 + $0x478] sm:$0xff] %vm1135, %v1350
  %v1359 = vld [vmem:[%s14] sm:$0xff]
  %v1360 = vld [vmem:[%s14 + $0x8] sm:$0xff]
  %v1361 = vld [vmem:[%s14 + $0x10] sm:$0xff]
  %v1362 = vld [vmem:[%s14 + $0x18] sm:$0xff]
  %v1363 = vld [vmem:[%s14 + $0x20] sm:$0xff]
  %v1364 = vld [vmem:[%s14 + $0x28] sm:$0xff]
  %v1365 = vld [vmem:[%s14 + $0x30] sm:$0xff]
  %v1366 = vld [vmem:[%s14 + $0x38] sm:$0xff]
  %1367 = vst [vmem:[%s19 + $0x480] sm:$0xff] %v1359
  %1368 = vst.msk [vmem:[%s19 + $0x488] sm:$0xff] %vm1135, %v1360
  %1369 = vst [vmem:[%s19 + $0x490] sm:$0xff] %v1361
  %1370 = vst.msk [vmem:[%s19 + $0x498] sm:$0xff] %vm1135, %v1362
  %1371 = vst [vmem:[%s19 + $0x4a0] sm:$0xff] %v1363
  %1372 = vst.msk [vmem:[%s19 + $0x4a8] sm:$0xff] %vm1135, %v1364
  %1373 = vst [vmem:[%s19 + $0x4b0] sm:$0xff] %v1365
  %1374 = vst.msk [vmem:[%s19 + $0x4b8] sm:$0xff] %vm1135, %v1366
  %v1375 = vld [vmem:[%s15] sm:$0xff]
  %v1376 = vld [vmem:[%s15 + $0x8] sm:$0xff]
  %v1377 = vld [vmem:[%s15 + $0x10] sm:$0xff]
  %v1378 = vld [vmem:[%s15 + $0x18] sm:$0xff]
  %v1379 = vld [vmem:[%s15 + $0x20] sm:$0xff]
  %v1380 = vld [vmem:[%s15 + $0x28] sm:$0xff]
  %v1381 = vld [vmem:[%s15 + $0x30] sm:$0xff]
  %v1382 = vld [vmem:[%s15 + $0x38] sm:$0xff]
  %1383 = vst [vmem:[%s19 + $0x4c0] sm:$0xff] %v1375
  %1384 = vst.msk [vmem:[%s19 + $0x4c8] sm:$0xff] %vm1135, %v1376
  %1385 = vst [vmem:[%s19 + $0x4d0] sm:$0xff] %v1377
  %1386 = vst.msk [vmem:[%s19 + $0x4d8] sm:$0xff] %vm1135, %v1378
  %1387 = vst [vmem:[%s19 + $0x4e0] sm:$0xff] %v1379
  %1388 = vst.msk [vmem:[%s19 + $0x4e8] sm:$0xff] %vm1135, %v1380
  %1389 = vst [vmem:[%s19 + $0x4f0] sm:$0xff] %v1381
  %1390 = vst.msk [vmem:[%s19 + $0x4f8] sm:$0xff] %vm1135, %v1382
  %v1391 = vld [vmem:[%s16] sm:$0xff]
  %v1392 = vld [vmem:[%s16 + $0x8] sm:$0xff]
  %v1393 = vld [vmem:[%s16 + $0x10] sm:$0xff]
  %v1394 = vld [vmem:[%s16 + $0x18] sm:$0xff]
  %v1395 = vld [vmem:[%s16 + $0x20] sm:$0xff]
  %v1396 = vld [vmem:[%s16 + $0x28] sm:$0xff]
  %v1397 = vld [vmem:[%s16 + $0x30] sm:$0xff]
  %v1398 = vld [vmem:[%s16 + $0x38] sm:$0xff]
  %1399 = vst [vmem:[%s19 + $0x500] sm:$0xff] %v1391
  %1400 = vst.msk [vmem:[%s19 + $0x508] sm:$0xff] %vm1135, %v1392
  %1401 = vst [vmem:[%s19 + $0x510] sm:$0xff] %v1393
  %1402 = vst.msk [vmem:[%s19 + $0x518] sm:$0xff] %vm1135, %v1394
  %1403 = vst [vmem:[%s19 + $0x520] sm:$0xff] %v1395
  %1404 = vst.msk [vmem:[%s19 + $0x528] sm:$0xff] %vm1135, %v1396
  %1405 = vst [vmem:[%s19 + $0x530] sm:$0xff] %v1397
  %1406 = vst.msk [vmem:[%s19 + $0x538] sm:$0xff] %vm1135, %v1398
  %v1407 = vld [vmem:[%s17] sm:$0xff]
  %v1408 = vld [vmem:[%s17 + $0x8] sm:$0xff]
  %v1409 = vld [vmem:[%s17 + $0x10] sm:$0xff]
  %v1410 = vld [vmem:[%s17 + $0x18] sm:$0xff]
  %v1411 = vld [vmem:[%s17 + $0x20] sm:$0xff]
  %v1412 = vld [vmem:[%s17 + $0x28] sm:$0xff]
  %v1413 = vld [vmem:[%s17 + $0x30] sm:$0xff]
  %v1414 = vld [vmem:[%s17 + $0x38] sm:$0xff]
  %1415 = vst [vmem:[%s19 + $0x540] sm:$0xff] %v1407
  %1416 = vst.msk [vmem:[%s19 + $0x548] sm:$0xff] %vm1135, %v1408
  %1417 = vst [vmem:[%s19 + $0x550] sm:$0xff] %v1409
  %1418 = vst.msk [vmem:[%s19 + $0x558] sm:$0xff] %vm1135, %v1410
  %1419 = vst [vmem:[%s19 + $0x560] sm:$0xff] %v1411
  %1420 = vst.msk [vmem:[%s19 + $0x568] sm:$0xff] %vm1135, %v1412
  %1421 = vst [vmem:[%s19 + $0x570] sm:$0xff] %v1413
  %1422 = vst.msk [vmem:[%s19 + $0x578] sm:$0xff] %vm1135, %v1414
  %1423 = vst [vmem:[%s19 + $0x580] sm:$0xff] %v1062
  %1424 = vst.msk [vmem:[%s19 + $0x588] sm:$0xff] %vm1135, %v1063
  %1425 = vst [vmem:[%s19 + $0x590] sm:$0xff] %v1064
  %1426 = vst.msk [vmem:[%s19 + $0x598] sm:$0xff] %vm1135, %v1065
  %1427 = vst [vmem:[%s19 + $0x5a0] sm:$0xff] %v1066
  %1428 = vst.msk [vmem:[%s19 + $0x5a8] sm:$0xff] %vm1135, %v1067
  %1429 = vst [vmem:[%s19 + $0x5b0] sm:$0xff] %v1068
  %1430 = vst.msk [vmem:[%s19 + $0x5b8] sm:$0xff] %vm1135, %v1069
  %v1431 = vld [vmem:[%s18] sm:$0xff]
  %v1432 = vld [vmem:[%s18 + $0x8] sm:$0xff]
  %v1433 = vld [vmem:[%s18 + $0x10] sm:$0xff]
  %v1434 = vld [vmem:[%s18 + $0x18] sm:$0xff]
  %v1435 = vld [vmem:[%s18 + $0x20] sm:$0xff]
  %v1436 = vld [vmem:[%s18 + $0x28] sm:$0xff]
  %v1437 = vld [vmem:[%s18 + $0x30] sm:$0xff]
  %v1438 = vld [vmem:[%s18 + $0x38] sm:$0xff]
  %1439 = vst [vmem:[%s19 + $0x5c0] sm:$0xff] %v1431
  %1440 = vst.msk [vmem:[%s19 + $0x5c8] sm:$0xff] %vm1135, %v1432
  %1441 = vst [vmem:[%s19 + $0x5d0] sm:$0xff] %v1433
  %1442 = vst.msk [vmem:[%s19 + $0x5d8] sm:$0xff] %vm1135, %v1434
  %1443 = vst [vmem:[%s19 + $0x5e0] sm:$0xff] %v1435
  %1444 = vst.msk [vmem:[%s19 + $0x5e8] sm:$0xff] %vm1135, %v1436
  %1445 = vst [vmem:[%s19 + $0x5f0] sm:$0xff] %v1437
  %1446 = vst.msk [vmem:[%s19 + $0x5f8] sm:$0xff] %vm1135, %v1438
  // Predicated region
  $region78: #{fused_conv_cat.1} parent=0 // pred_check
    _
  $region79: #{fused_conv_cat.1} parent=0 // pred_check_branch
    %1448 = sbr.rel (0) target = $region81
  $region80: #{fused_conv_cat.1} parent=0 // pred_region
    _
  $region81: #{fused_conv_cat.1} parent=0 // pred_fallthru
    _
  // Predicated region
  $region82: #{fused_conv_cat.1} parent=0 // pred_check
    _
  $region83: #{fused_conv_cat.1} parent=0 // pred_check_branch
    %1450 = sbr.rel (0) target = $region85
  $region84: #{fused_conv_cat.1} parent=0 // pred_region
    _
  $region85: #{fused_conv_cat.1} parent=0 // pred_fallthru
    _

</llo_original>
